<compile_context>
chip_gen: v7x
topology: tpu7x:2x2x1
jax: 0.10.0
libtpu: 0.0.40
codegen_flags: <defaults>
</compile_context>

<pallas_src>
import jax
import jax.numpy as jnp
from jax.experimental import pallas as pl
from jax.experimental.pallas import tpu as pltpu


# --------------------------------------------------------------------------
# Kernel
# --------------------------------------------------------------------------
def _sae_kernel(x_ref, w_enc_ref, b_enc_ref, w_dec_ref, b_dec_ref,
                xhat_ref, feat_ref, *scratch):
    # If x_hat is f32 we accumulate straight into its output block (the
    # BlockSpec keeps it resident across the feature axis j); otherwise the
    # wrapper appends a f32 VMEM scratch accumulator.
    acc_ref = scratch[0] if scratch else xhat_ref
    fj = pl.program_id(1)

    @pl.when(fj == 0)
    def _init():
        acc_ref[...] = jnp.zeros_like(acc_ref)

    # Encoder tile: (TB, D) @ (D, TF) -> bf16 MXU feed, f32 accumulation.
    pre = jnp.dot(x_ref[...], w_enc_ref[...],
                  preferred_element_type=jnp.float32)
    features = jnp.maximum(pre + b_enc_ref[...], 0.0)      # f32 bias + ReLU (VPU)
    feat_ref[...] = features.astype(feat_ref.dtype)

    # Decoder partial product: (TB, TF) @ (TF, D), accumulated over j.
    acc_ref[...] += jnp.dot(features.astype(w_dec_ref.dtype), w_dec_ref[...],
                            preferred_element_type=jnp.float32)

    @pl.when(fj == pl.num_programs(1) - 1)
    def _finalize():
        xhat_ref[...] = (acc_ref[...] + b_dec_ref[...]).astype(xhat_ref.dtype)


# --------------------------------------------------------------------------
# VMEM-aware tile selection
# --------------------------------------------------------------------------
def _vmem_capacity_bytes():
    try:
        return int(pltpu.get_tpu_info().vmem_capacity_bytes)
    except Exception:
        return 64 << 20   # v7x per-core VMEM: safe lower bound across gens


def _largest_divisor(n, cap, quantum):
    """Largest divisor of n that is <= cap and a multiple of `quantum`.
    Falls back to n itself (the full dim is always a legal Pallas block)."""
    cap = min(cap, n)
    t = cap - (cap % quantum)
    while t >= quantum:
        if n % t == 0:
            return t
        t -= quantum
    return n


def _vmem_footprint(tile_b, tile_f, D, cbytes, feat_bytes, xhat_bytes,
                    use_scratch):
    db = 2  # BlockSpec double-buffering
    total = db * (tile_b * D * cbytes            # x tile
                  + D * tile_f * cbytes          # W_enc tile
                  + tile_f * 4                   # b_enc tile (f32)
                  + tile_f * D * cbytes          # W_dec tile
                  + D * 4                        # b_dec (f32)
                  + tile_b * D * xhat_bytes      # x_hat out tile
                  + tile_b * tile_f * feat_bytes)  # features out tile
    if use_scratch:
        total += tile_b * D * 4                  # f32 accumulator
    return total


def _pick_tiles(B, D, F, cbytes, feat_bytes, xhat_bytes, use_scratch, budget):
    # Weight HBM traffic scales as B/tile_b -> keep tile_b large, but keep
    # >= 2 batch tiles when B allows so v7x megacore gets both TensorCores.
    tb_cap = B if B < 256 else min(1024, max(128, B // 2))
    tile_b = _largest_divisor(B, tb_cap, 8)
    tile_f = _largest_divisor(F, min(F, 1024), 128)

    def fits(tb, tf):
        return _vmem_footprint(tb, tf, D, cbytes, feat_bytes, xhat_bytes,
                               use_scratch) <= budget

    while not fits(tile_b, tile_f):
        if tile_f > 128:
            new_tf = _largest_divisor(F, tile_f // 2, 128)
            if new_tf < tile_f:
                tile_f = new_tf
                continue
        if tile_b > 8:
            new_tb = _largest_divisor(B, tile_b // 2, 8)
            if new_tb < tile_b:
                tile_b = new_tb
                continue
        break  # cannot shrink further; rely on vmem_limit headroom
    return tile_b, tile_f


# --------------------------------------------------------------------------
# Wrapper
# --------------------------------------------------------------------------
def sparse_autoencoder_forward(x, w_enc, b_enc, w_dec, b_dec, *,
                               tile_b=None, tile_f=None,
                               features_dtype=None,
                               compute_dtype=jnp.bfloat16,
                               vmem_limit_bytes=None):
    """x: (B, D); w_enc: (D, F); b_enc: (F,); w_dec: (F, D); b_dec: (D,)."""
    B, D = x.shape
    F = w_enc.shape[1]
    out_dtype = x.dtype
    if features_dtype is None:
        features_dtype = out_dtype

    cbytes = jnp.dtype(compute_dtype).itemsize
    feat_bytes = jnp.dtype(features_dtype).itemsize
    xhat_bytes = jnp.dtype(out_dtype).itemsize
    use_scratch = jnp.dtype(out_dtype) != jnp.dtype(jnp.float32)

    cap = _vmem_capacity_bytes()
    budget = int(cap * 0.75)

    auto_tb, auto_tf = _pick_tiles(B, D, F, cbytes, feat_bytes, xhat_bytes,
                                   use_scratch, budget)
    tile_b = auto_tb if tile_b is None else tile_b
    tile_f = auto_tf if tile_f is None else tile_f
    if B % tile_b != 0 or F % tile_f != 0:
        raise ValueError("pad batch / feature dims to multiples of the tiles")

    footprint = _vmem_footprint(tile_b, tile_f, D, cbytes, feat_bytes,
                                xhat_bytes, use_scratch)
    if vmem_limit_bytes is None:
        vmem_limit_bytes = min(int(cap * 0.9),
                               max(footprint + (8 << 20), 32 << 20))

    # Cast MXU operands to bf16 ONCE here (not per grid step in the kernel).
    x_c = x.astype(compute_dtype)
    w_enc_c = w_enc.astype(compute_dtype)
    w_dec_c = w_dec.astype(compute_dtype)
    b_enc2 = b_enc.reshape(1, F).astype(jnp.float32)
    b_dec2 = b_dec.reshape(1, D).astype(jnp.float32)

    grid = (B // tile_b, F // tile_f)
    num_btiles = grid[0]

    out_shapes = (
        jax.ShapeDtypeStruct((B, D), out_dtype),        # x_hat
        jax.ShapeDtypeStruct((B, F), features_dtype),   # features
    )

    cost = pl.CostEstimate(
        flops=int(4 * B * D * F),                 # two (B, D, F) matmuls
        transcendentals=0,
        bytes_accessed=int(B * D * cbytes                    # x read
                           + num_btiles * D * F * cbytes     # W_enc re-streamed
                           + num_btiles * F * 4              # b_enc re-streamed
                           + num_btiles * F * D * cbytes     # W_dec re-streamed
                           + num_btiles * D * 4              # b_dec re-streamed
                           + B * D * xhat_bytes              # x_hat write
                           + B * F * feat_bytes),            # features write
    )

    scratch_shapes = ([pltpu.VMEM((tile_b, D), jnp.float32)]
                      if use_scratch else [])

    return pl.pallas_call(
        _sae_kernel,
        out_shape=out_shapes,
        grid_spec=pltpu.PrefetchScalarGridSpec(
            num_scalar_prefetch=0,
            grid=grid,
            in_specs=[
                pl.BlockSpec((tile_b, D), lambda i, j: (i, 0)),      # x tile
                pl.BlockSpec((D, tile_f), lambda i, j: (0, j)),      # W_enc tile
                pl.BlockSpec((1, tile_f), lambda i, j: (0, j)),      # b_enc tile
                pl.BlockSpec((tile_f, D), lambda i, j: (j, 0)),      # W_dec tile
                pl.BlockSpec((1, D), lambda i, j: (0, 0)),           # b_dec
            ],
            out_specs=[
                pl.BlockSpec((tile_b, D), lambda i, j: (i, 0)),      # x_hat (resident over j)
                pl.BlockSpec((tile_b, tile_f), lambda i, j: (i, j)),  # features
            ],
            scratch_shapes=scratch_shapes,
        ),
        compiler_params=pltpu.CompilerParams(
            dimension_semantics=("parallel", "arbitrary"),
            vmem_limit_bytes=vmem_limit_bytes,
        ),
        cost_estimate=cost,
    )(x_c, w_enc_c, b_enc2, w_dec_c, b_dec2)


# --------------------------------------------------------------------------
# Demo / self-check
# --------------------------------------------------------------------------
def _init_params(key, input_dim, feature_dim, dtype=jnp.float32):
    """nn.Linear-style U(-1/sqrt(fan_in), 1/sqrt(fan_in)) init, weights (in, out)."""
    k1, k2, k3, k4 = jax.random.split(key, 4)
    eb = 1.0 / (input_dim ** 0.5)
    db = 1.0 / (feature_dim ** 0.5)
    w_enc = jax.random.uniform(k1, (input_dim, feature_dim), dtype, -eb, eb)
    b_enc = jax.random.uniform(k2, (feature_dim,), dtype, -eb, eb)
    w_dec = jax.random.uniform(k3, (feature_dim, input_dim), dtype, -db, db)
    b_dec = jax.random.uniform(k4, (input_dim,), dtype, -db, db)
    return w_enc, b_enc, w_dec, b_dec


if __name__ == "__main__":
    key = jax.random.PRNGKey(0)
    B, D, F = 256, 128, 512

    kx, kp = jax.random.split(key)
    x = jax.random.normal(kx, (B, D), dtype=jnp.float32)
    w_enc, b_enc, w_dec, b_dec = _init_params(kp, D, F)

    # Pure-JAX f32 reference.
    feat_ref = jnp.maximum(x @ w_enc + b_enc, 0.0)
    xhat_ref = feat_ref @ w_dec + b_dec

    # 1) Auto-tiled path (f32 output -> no scratch, accumulate into x_hat).
    x_hat, features = sparse_autoencoder_forward(x, w_enc, b_enc, w_dec, b_dec)
    jax.block_until_ready((x_hat, features))
    assert x_hat.shape == (B, D) and features.shape == (B, F)
    assert jnp.allclose(features, feat_ref, atol=3e-2, rtol=3e-2)
    assert jnp.allclose(x_hat, xhat_ref, atol=3e-2, rtol=3e-2)

    # 2) Explicit tiles exercising the 2-step feature reduction (grid (2, 2)).
    x_hat2, features2 = sparse_autoencoder_forward(
        x, w_enc, b_enc, w_dec, b_dec, tile_b=128, tile_f=256)
    jax.block_until_ready((x_hat2, features2))
    assert jnp.allclose(features2, feat_ref, atol=3e-2, rtol=3e-2)
    assert jnp.allclose(x_hat2, xhat_ref, atol=3e-2, rtol=3e-2)

    # 3) bf16 input path exercising the f32 scratch accumulator + bf16 outputs.
    x_hat3, features3 = sparse_autoencoder_forward(
        x.astype(jnp.bfloat16), w_enc, b_enc, w_dec, b_dec,
        tile_b=128, tile_f=256)
    jax.block_until_ready((x_hat3, features3))
    assert x_hat3.dtype == jnp.bfloat16 and features3.dtype == jnp.bfloat16
    assert jnp.allclose(features3.astype(jnp.float32), feat_ref,
                        atol=6e-2, rtol=6e-2)
    assert jnp.allclose(x_hat3.astype(jnp.float32), xhat_ref,
                        atol=6e-2, rtol=6e-2)

    print("KERNEL_OK")
</pallas_src>

<mosaic_0001>
module attributes {stable_mosaic.version = 11 : i64} {
  func.func @_sae_kernel(%arg0: i32, %arg1: i32, %arg2: memref<128x128xbf16, #tpu.memory_space<vmem>>, %arg3: memref<128x512xbf16, #tpu.memory_space<vmem>>, %arg4: memref<1x512xf32, #tpu.memory_space<vmem>>, %arg5: memref<512x128xbf16, #tpu.memory_space<vmem>>, %arg6: memref<1x128xf32, #tpu.memory_space<vmem>>, %arg7: memref<128x128xf32, #tpu.memory_space<vmem>>, %arg8: memref<128x512xf32, #tpu.memory_space<vmem>>) attributes {dimension_semantics = [#tpu.dimension_semantics<parallel>, #tpu.dimension_semantics<arbitrary>], iteration_bounds = array<i64: 2, 1>, scalar_prefetch = 0 : i64, scratch_operands = 0 : i64, tpu.core_type = #tpu.core_type<tc>, window_params = [{transform_indices = @transform_0, window_bounds = array<i64: 128, 128>}, {transform_indices = @transform_1, window_bounds = array<i64: 128, 512>}, {transform_indices = @transform_2, window_bounds = array<i64: 1, 512>}, {transform_indices = @transform_3, window_bounds = array<i64: 512, 128>}, {pipeline_mode = #tpu.pipeline_mode<synchronous>, transform_indices = @transform_4, window_bounds = array<i64: 1, 128>}, {transform_indices = @transform_5, window_bounds = array<i64: 128, 128>}, {transform_indices = @transform_6, window_bounds = array<i64: 128, 512>}]} {
    %c0_i32 = arith.constant 0 : i32
    %0 = arith.cmpi eq, %arg1, %c0_i32 : i32
    %1 = arith.extui %0 : i1 to i32
    %c0_i32_0 = arith.constant 0 : i32
    %2 = arith.cmpi ne, %1, %c0_i32_0 : i32
    scf.if %2 {
      %cst_18 = arith.constant 0.000000e+00 : f32
      %21 = vector.broadcast %cst_18 : f32 to vector<128x128xf32>
      %c0_19 = arith.constant 0 : index
      %c0_20 = arith.constant 0 : index
      %22 = vector.load %arg7[%c0_19, %c0_20] : memref<128x128xf32, #tpu.memory_space<vmem>>, vector<128x128xf32>
      tpu.vector_store %arg7[%c0_19, %c0_20], %21 {strides = array<i32>} : memref<128x128xf32, #tpu.memory_space<vmem>>, vector<128x128xf32>,
    } else {
    }
    %c0 = arith.constant 0 : index
    %c0_1 = arith.constant 0 : index
    %3 = vector.load %arg2[%c0, %c0_1] : memref<128x128xbf16, #tpu.memory_space<vmem>>, vector<128x128xbf16>
    %c0_2 = arith.constant 0 : index
    %c0_3 = arith.constant 0 : index
    %4 = vector.load %arg3[%c0_2, %c0_3] : memref<128x512xbf16, #tpu.memory_space<vmem>>, vector<128x512xbf16>
    %cst = arith.constant dense<0.000000e+00> : vector<128x512xf32>
    %5 = tpu.matmul %3, %4, %cst {dimension_numbers = #tpu.dot_dimension_numbers<[1], [0], [0], [1], [0, 0, 1, 1], [], []>} : vector<128x128xbf16>, vector<128x512xbf16>, vector<128x512xf32> -> vector<128x512xf32>
    %c0_4 = arith.constant 0 : index
    %c0_5 = arith.constant 0 : index
    %6 = vector.load %arg4[%c0_4, %c0_5] : memref<1x512xf32, #tpu.memory_space<vmem>>, vector<1x512xf32>
    %7 = vector.broadcast %6 : vector<1x512xf32> to vector<128x512xf32>
    %8 = arith.addf %5, %7 : vector<128x512xf32>
    %cst_6 = arith.constant 0.000000e+00 : f32
    %9 = vector.broadcast %cst_6 : f32 to vector<128x512xf32>
    %10 = arith.maximumf %8, %9 : vector<128x512xf32>
    %c0_7 = arith.constant 0 : index
    %c0_8 = arith.constant 0 : index
    %11 = vector.load %arg8[%c0_7, %c0_8] : memref<128x512xf32, #tpu.memory_space<vmem>>, vector<128x512xf32>
    tpu.vector_store %arg8[%c0_7, %c0_8], %10 {strides = array<i32>} : memref<128x512xf32, #tpu.memory_space<vmem>>, vector<128x512xf32>,
    %c0_9 = arith.constant 0 : index
    %c0_10 = arith.constant 0 : index
    %12 = vector.load %arg7[%c0_9, %c0_10] : memref<128x128xf32, #tpu.memory_space<vmem>>, vector<128x128xf32>
    %13 = arith.truncf %10 : vector<128x512xf32> to vector<128x512xbf16>
    %c0_11 = arith.constant 0 : index
    %c0_12 = arith.constant 0 : index
    %14 = vector.load %arg5[%c0_11, %c0_12] : memref<512x128xbf16, #tpu.memory_space<vmem>>, vector<512x128xbf16>
    %cst_13 = arith.constant dense<0.000000e+00> : vector<128x128xf32>
    %15 = tpu.matmul %13, %14, %cst_13 {dimension_numbers = #tpu.dot_dimension_numbers<[1], [0], [0], [1], [0, 0, 1, 1], [], []>} : vector<128x512xbf16>, vector<512x128xbf16>, vector<128x128xf32> -> vector<128x128xf32>
    %16 = arith.addf %12, %15 : vector<128x128xf32>
    %c0_14 = arith.constant 0 : index
    %c0_15 = arith.constant 0 : index
    %17 = vector.load %arg7[%c0_14, %c0_15] : memref<128x128xf32, #tpu.memory_space<vmem>>, vector<128x128xf32>
    tpu.vector_store %arg7[%c0_14, %c0_15], %16 {strides = array<i32>} : memref<128x128xf32, #tpu.memory_space<vmem>>, vector<128x128xf32>,
    %c0_i32_16 = arith.constant 0 : i32
    %18 = arith.cmpi eq, %arg1, %c0_i32_16 : i32
    %19 = arith.extui %18 : i1 to i32
    %c0_i32_17 = arith.constant 0 : i32
    %20 = arith.cmpi ne, %19, %c0_i32_17 : i32
    scf.if %20 {
      %c0_18 = arith.constant 0 : index
      %c0_19 = arith.constant 0 : index
      %21 = vector.load %arg7[%c0_18, %c0_19] : memref<128x128xf32, #tpu.memory_space<vmem>>, vector<128x128xf32>
      %c0_20 = arith.constant 0 : index
      %c0_21 = arith.constant 0 : index
      %22 = vector.load %arg6[%c0_20, %c0_21] : memref<1x128xf32, #tpu.memory_space<vmem>>, vector<1x128xf32>
      %23 = vector.broadcast %22 : vector<1x128xf32> to vector<128x128xf32>
      %24 = arith.addf %21, %23 : vector<128x128xf32>
      %c0_22 = arith.constant 0 : index
      %c0_23 = arith.constant 0 : index
      %25 = vector.load %arg7[%c0_22, %c0_23] : memref<128x128xf32, #tpu.memory_space<vmem>>, vector<128x128xf32>
      tpu.vector_store %arg7[%c0_22, %c0_23], %24 {strides = array<i32>} : memref<128x128xf32, #tpu.memory_space<vmem>>, vector<128x128xf32>,
    } else {
    }
    return
  }
  func.func @transform_0(%arg0: i32, %arg1: i32) -> (i32, i32) {
    %c0_i32 = arith.constant 0 : i32
    %c0_i32_0 = arith.constant 0 : i32
    return %arg0, %c0_i32 : i32, i32
  }
  func.func @transform_1(%arg0: i32, %arg1: i32) -> (i32, i32) {
    %c0_i32 = arith.constant 0 : i32
    %c0_i32_0 = arith.constant 0 : i32
    return %c0_i32, %arg1 : i32, i32
  }
  func.func @transform_2(%arg0: i32, %arg1: i32) -> (i32, i32) {
    %c0_i32 = arith.constant 0 : i32
    %c0_i32_0 = arith.constant 0 : i32
    return %c0_i32, %arg1 : i32, i32
  }
  func.func @transform_3(%arg0: i32, %arg1: i32) -> (i32, i32) {
    %c0_i32 = arith.constant 0 : i32
    %c0_i32_0 = arith.constant 0 : i32
    return %arg1, %c0_i32 : i32, i32
  }
  func.func @transform_4(%arg0: i32, %arg1: i32) -> (i32, i32) {
    %c0_i32 = arith.constant 0 : i32
    %c0_i32_0 = arith.constant 0 : i32
    %c0_i32_1 = arith.constant 0 : i32
    return %c0_i32, %c0_i32_0 : i32, i32
  }
  func.func @transform_5(%arg0: i32, %arg1: i32) -> (i32, i32) {
    %c0_i32 = arith.constant 0 : i32
    %c0_i32_0 = arith.constant 0 : i32
    return %arg0, %c0_i32 : i32, i32
  }
  func.func @transform_6(%arg0: i32, %arg1: i32) -> (i32, i32) {
    %c0_i32 = arith.constant 0 : i32
    return %arg0, %arg1 : i32, i32
  }
}

</mosaic_0001>

<llo_original>
// kernel: tpu_custom_call.1
$region0: #{tpu_custom_call.1}
  #allocation0 [shape = 'u32[]', space=smem, size = 0x4, offset = 0x4, fixed_abs, tag = 'smem constant byte address 0x4 - core index']
  #allocation1 [shape = 'u32[144,128]{1,0:T(1,128)}', space=vmem, size = 0x12000, scoped, tag = 'internal scratch']
  %s0 = inlined_call_operand.hbm [shape: bf16[256,128], index: 0, kind: input, shape index: {}]
  %s1 = inlined_call_operand.hbm [shape: bf16[128,512], index: 1, kind: input, shape index: {}]
  %s2 = inlined_call_operand.vmem [shape: f32[1,512], index: 2, kind: input, shape index: {}]
  %s3 = inlined_call_operand.hbm [shape: bf16[512,128], index: 3, kind: input, shape index: {}]
  %s4 = inlined_call_operand.vmem [shape: f32[1,128], index: 4, kind: input, shape index: {}]
  %s5 = inlined_call_operand.hbm [shape: f32[256,128], index: 5, kind: output, shape index: {0}]
  %s6 = inlined_call_operand.hbm [shape: f32[256,512], index: 6, kind: output, shape index: {1}]
  %7 = xla_tuple %s5, %s6
  %s8 = sld [smem:[#allocation0]]
  $region81: #{tpu_custom_call.1} parent=0
    _
  %s10 = ssub.s32 1, %s8
  %s11 = scalar_select 0, %s10, %s8
  $region1: #{tpu_custom_call.1} parent=0
    #allocation2 [shape = 'u8[65536]{0}', space=vmem, size = 0x10000, scoped, tag = 'input window, operand 0']
    #allocation3 [shape = 's32[2]{0}', space=sflag, size = 0x8, scoped, tag = 'scoped memory for tpu_custom_call.1']
    #allocation4 [shape = 's32[2]{0}', space=sflag, size = 0x8, scoped, tag = 'scoped memory for tpu_custom_call.1']
    #allocation5 [shape = 'u8[131072]{0}', space=vmem, size = 0x20000, scoped, tag = 'input window, operand 1, single buffered']
    #allocation6 [shape = 's32[1]{0}', space=sflag, size = 0x4, scoped, tag = 'scoped memory for tpu_custom_call.1']
    #allocation7 [shape = 'u8[131072]{0}', space=vmem, size = 0x20000, scoped, tag = 'input window, operand 3, single buffered']
    #allocation8 [shape = 'u8[131072]{0}', space=vmem, size = 0x20000, scoped, tag = 'output window, operand 0']
    #allocation9 [shape = 'u8[524288]{0}', space=vmem, size = 0x80000, scoped, tag = 'output window, operand 1']
    #allocation10 [shape = 's32[2]{0}', space=sflag, size = 0x8, scoped, tag = 'scoped memory for tpu_custom_call.1']
    %12 = vsyncpa [#allocation3], 0
    %s13 = scalar_lea.sflag [#allocation3], 1
    %14 = vsyncpa %s13, 0
    %15 = vsyncpa [#allocation6], 0
    %16 = vsyncpa [#allocation4], 0
    %s17 = scalar_lea.sflag [#allocation4], 1
    %18 = vsyncpa %s17, 0
    %19 = vsyncpa [#allocation10], 0
    %s20 = scalar_lea.sflag [#allocation10], 1
    %21 = vsyncpa %s20, 0
    loop: start=0, step=1, limit=4
    $region2: #{tpu_custom_call.1} parent=1 // loop_pre_header
      _
    $region3: #{tpu_custom_call.1} parent=1 // loop_header
      %s23 = sphi 0, %s27
      %p24 = scmp.ge.s32.totalorder %s23, 4
      %s30 = sphi 0, %s42
      %s31 = sphi 0, %s38
      %s32 = sphi 0, %s30
      %s33 = sphi 0, %s31
      %s34 = sphi 0, %s32
      %s35 = sphi 0, %s33
      %s45 = sphi 0, %s47
      %s48 = sphi 0, %s45
      %s49 = sphi 0, %s48
      %s65 = sphi 0, %s49
      %s71 = sphi 0, %s73
      %s74 = sphi 0, %s71
      %s75 = sphi 0, %s74
      %s91 = sphi 0, %s75
      %s97 = sphi 0, %s99
      %s100 = sphi 0, %s97
      %s101 = sphi 0, %s100
      %s117 = sphi 0, %s101
      %s123 = sphi 0, %s125
      %s126 = sphi 0, %s123
      %s127 = sphi 0, %s126
      %s143 = sphi 0, %s127
      %s147 = sphi 0, %s147
      %s149 = sphi 0, %s147
      %s150 = sphi 0, %s149
      %s164 = sphi 0, %s150
      %s170 = sphi 0, %s172
      %s173 = sphi 0, %s170
      %s174 = sphi 0, %s173
      %s190 = sphi 0, %s174
      %s198 = sphi 0, %s200
      %s201 = sphi 0, %s198
      %s202 = sphi 0, %s201
      %s218 = sphi 0, %s202
    $region4: #{tpu_custom_call.1} parent=1 // loop_header_branch
      %26 = sbr.rel (%p24) target = $region8
    $region5: #{tpu_custom_call.1} parent=1 // loop_body
      %s28 = ssub.s32 %s23, 1
      %s29 = ssub.s32 %s23, 2
      %s36 = sadd.s32 1, %s31
      %p37 = scmp.ge.s32.totalorder %s36, 1
      %s38 = scalar_select %p37, 0, %s36
      %s39 = sadd.s32 1, %s30
      %s40 = scalar_select %p37, %s39, %s30
      %p41 = scmp.ge.s32.totalorder %s40, 2
      %s42 = scalar_select %p41, 0, %s40
      %s43 = ssub.s32 %s30, %s42
      %p44 = scmp.eq.s32.totalorder %s43, 0
      %s46 = sadd.s32 %s45, 1
      %s47 = scalar_select %p44, %s45, %s46
      %p50 = pneg %p44
      %p51 = scmp.eq.s32.totalorder %s23, 1
      %p52 = por %p50, %p51
      %p53 = scmp.ne.s32.totalorder %s45, %s48
      %p54 = scmp.eq.s32.totalorder %s23, 0
      %p55 = por %p53, %p54
      %p56 = scmp.ne.s32.totalorder %s45, %s48
      %p57 = scmp.eq.s32.totalorder %s28, 1
      %p58 = por %p56, %p57
      %p59 = scmp.ne.s32.totalorder %s48, %s49
      %p60 = scmp.eq.s32.totalorder %s28, 0
      %p61 = por %p59, %p60
      %p62 = scmp.ne.s32.totalorder %s48, %s49
      %p63 = scmp.eq.s32.totalorder %s29, 1
      %p64 = por %p62, %p63
      %p66 = scmp.ne.s32.totalorder %s49, %s65
      %p67 = scmp.eq.s32.totalorder %s29, 0
      %p68 = por %p66, %p67
      %s69 = ssub.s32 %s31, %s38
      %p70 = scmp.eq.s32.totalorder %s69, 0
      %s72 = sadd.s32 %s71, 1
      %s73 = scalar_select %p70, %s71, %s72
      %p76 = pneg %p70
      %p77 = scmp.eq.s32.totalorder %s23, 1
      %p78 = por %p76, %p77
      %p79 = scmp.ne.s32.totalorder %s71, %s74
      %p80 = scmp.eq.s32.totalorder %s23, 0
      %p81 = por %p79, %p80
      %p82 = scmp.ne.s32.totalorder %s71, %s74
      %p83 = scmp.eq.s32.totalorder %s28, 1
      %p84 = por %p82, %p83
      %p85 = scmp.ne.s32.totalorder %s74, %s75
      %p86 = scmp.eq.s32.totalorder %s28, 0
      %p87 = por %p85, %p86
      %p88 = scmp.ne.s32.totalorder %s74, %s75
      %p89 = scmp.eq.s32.totalorder %s29, 1
      %p90 = por %p88, %p89
      %p92 = scmp.ne.s32.totalorder %s75, %s91
      %p93 = scmp.eq.s32.totalorder %s29, 0
      %p94 = por %p92, %p93
      %s95 = ssub.s32 %s31, %s38
      %p96 = scmp.eq.s32.totalorder %s95, 0
      %s98 = sadd.s32 %s97, 1
      %s99 = scalar_select %p96, %s97, %s98
      %p102 = pneg %p96
      %p103 = scmp.eq.s32.totalorder %s23, 1
      %p104 = por %p102, %p103
      %p105 = scmp.ne.s32.totalorder %s97, %s100
      %p106 = scmp.eq.s32.totalorder %s23, 0
      %p107 = por %p105, %p106
      %p108 = scmp.ne.s32.totalorder %s97, %s100
      %p109 = scmp.eq.s32.totalorder %s28, 1
      %p110 = por %p108, %p109
      %p111 = scmp.ne.s32.totalorder %s100, %s101
      %p112 = scmp.eq.s32.totalorder %s28, 0
      %p113 = por %p111, %p112
      %p114 = scmp.ne.s32.totalorder %s100, %s101
      %p115 = scmp.eq.s32.totalorder %s29, 1
      %p116 = por %p114, %p115
      %p118 = scmp.ne.s32.totalorder %s101, %s117
      %p119 = scmp.eq.s32.totalorder %s29, 0
      %p120 = por %p118, %p119
      %s121 = ssub.s32 %s31, %s38
      %p122 = scmp.eq.s32.totalorder %s121, 0
      %s124 = sadd.s32 %s123, 1
      %s125 = scalar_select %p122, %s123, %s124
      %p128 = pneg %p122
      %p129 = scmp.eq.s32.totalorder %s23, 1
      %p130 = por %p128, %p129
      %p131 = scmp.ne.s32.totalorder %s123, %s126
      %p132 = scmp.eq.s32.totalorder %s23, 0
      %p133 = por %p131, %p132
      %p134 = scmp.ne.s32.totalorder %s123, %s126
      %p135 = scmp.eq.s32.totalorder %s28, 1
      %p136 = por %p134, %p135
      %p137 = scmp.ne.s32.totalorder %s126, %s127
      %p138 = scmp.eq.s32.totalorder %s28, 0
      %p139 = por %p137, %p138
      %p140 = scmp.ne.s32.totalorder %s126, %s127
      %p141 = scmp.eq.s32.totalorder %s29, 1
      %p142 = por %p140, %p141
      %p144 = scmp.ne.s32.totalorder %s127, %s143
      %p145 = scmp.eq.s32.totalorder %s29, 0
      %p146 = por %p144, %p145
      %s148 = sadd.s32 %s147, 1
      %p151 = scmp.eq.s32.totalorder %s23, 1
      %p152 = scmp.ne.s32.totalorder %s147, %s149
      %p153 = scmp.eq.s32.totalorder %s23, 0
      %p154 = por %p152, %p153
      %p155 = scmp.ne.s32.totalorder %s147, %s149
      %p156 = scmp.eq.s32.totalorder %s28, 1
      %p157 = por %p155, %p156
      %p158 = scmp.ne.s32.totalorder %s149, %s150
      %p159 = scmp.eq.s32.totalorder %s28, 0
      %p160 = por %p158, %p159
      %p161 = scmp.ne.s32.totalorder %s149, %s150
      %p162 = scmp.eq.s32.totalorder %s29, 1
      %p163 = por %p161, %p162
      %p165 = scmp.ne.s32.totalorder %s150, %s164
      %p166 = scmp.eq.s32.totalorder %s29, 0
      %p167 = por %p165, %p166
      %s168 = ssub.s32 %s30, %s42
      %p169 = scmp.eq.s32.totalorder %s168, 0
      %s171 = sadd.s32 %s170, 1
      %s172 = scalar_select %p169, %s170, %s171
      %p175 = pneg %p169
      %p176 = scmp.eq.s32.totalorder %s23, 1
      %p177 = por %p175, %p176
      %p178 = scmp.ne.s32.totalorder %s170, %s173
      %p179 = scmp.eq.s32.totalorder %s23, 0
      %p180 = por %p178, %p179
      %p181 = scmp.ne.s32.totalorder %s170, %s173
      %p182 = scmp.eq.s32.totalorder %s28, 1
      %p183 = por %p181, %p182
      %p184 = scmp.ne.s32.totalorder %s173, %s174
      %p185 = scmp.eq.s32.totalorder %s28, 0
      %p186 = por %p184, %p185
      %p187 = scmp.ne.s32.totalorder %s173, %s174
      %p188 = scmp.eq.s32.totalorder %s29, 1
      %p189 = por %p187, %p188
      %p191 = scmp.ne.s32.totalorder %s174, %s190
      %p192 = scmp.eq.s32.totalorder %s29, 0
      %p193 = por %p191, %p192
      %s194 = ssub.s32 %s30, %s42
      %s195 = ssub.s32 %s31, %s38
      %s196 = sor.u32 %s194, %s195
      %p197 = scmp.eq.s32.totalorder %s196, 0
      %s199 = sadd.s32 %s198, 1
      %s200 = scalar_select %p197, %s198, %s199
      %p203 = pneg %p197
      %p204 = scmp.eq.s32.totalorder %s23, 1
      %p205 = por %p203, %p204
      %p206 = scmp.ne.s32.totalorder %s198, %s201
      %p207 = scmp.eq.s32.totalorder %s23, 0
      %p208 = por %p206, %p207
      %p209 = scmp.ne.s32.totalorder %s198, %s201
      %p210 = scmp.eq.s32.totalorder %s28, 1
      %p211 = por %p209, %p210
      %p212 = scmp.ne.s32.totalorder %s201, %s202
      %p213 = scmp.eq.s32.totalorder %s28, 0
      %p214 = por %p212, %p213
      %p215 = scmp.ne.s32.totalorder %s201, %s202
      %p216 = scmp.eq.s32.totalorder %s29, 1
      %p217 = por %p215, %p216
      %p219 = scmp.ne.s32.totalorder %s202, %s218
      %p220 = scmp.eq.s32.totalorder %s29, 0
      %p221 = por %p219, %p220
      %p222 = scmp.le.s32.totalorder 1, %s23
      %p223 = scmp.lt.s32.totalorder %s23, 3
      %p224 = pnand %p222, %p223
      %p225 = pneg %p224
      // Predicated region
      $region9: #{tpu_custom_call.1} parent=5 // pred_check
        _
      $region10: #{tpu_custom_call.1} parent=5 // pred_check_branch
        %227 = sbr.rel (%p224) target = $region12
      $region11: #{tpu_custom_call.1} parent=5 // pred_region
        %s228 = ssub.s32 %s23, 1
        // Predicated region
        $region13: #{tpu_custom_call.1} parent=11 // pred_check
          %p229 = pneg %p87
        $region14: #{tpu_custom_call.1} parent=11 // pred_check_branch
          %231 = sbr.rel (%p229) target = $region16
        $region15: #{tpu_custom_call.1} parent=11 // pred_region
          %s232 = smul.u32 4, %s33
          %s234 = ssub.s32 4096, 4096
          %235 = vsyncadd [#allocation6], %s234
          %s236 = smul.addr %s232, 64
          %s237 = scalar_lea.hbm %s1, %s236
          %s238 = sshll.u32 [#allocation5], 4
          %s239 = int_to_ptr.vmem [resolvable:$true] %s238
          %244 = dma.hbm_to_vmem [thread:$0]  %s237, 4096, %s239, [#allocation6], 256, 256, 16
        $region16: #{tpu_custom_call.1} parent=11 // pred_fallthru
          _
        // Predicated region
        $region17: #{tpu_custom_call.1} parent=11 // pred_check
          %p245 = pneg %p113
        $region18: #{tpu_custom_call.1} parent=11 // pred_check_branch
          %247 = sbr.rel (%p245) target = $region20
        $region19: #{tpu_custom_call.1} parent=11 // pred_region
          %s248 = smul.u32 4, %s33
          %p249 = scmp.lt.s32.totalorder %s248, 3
          %s250 = scalar_select %p249, %s248, 3
          %s251 = scalar_lea.vmem %s2, %s250
          %s252 = smul.u32 4, %s33
        $region20: #{tpu_custom_call.1} parent=11 // pred_fallthru
          _
        // Predicated region
        $region21: #{tpu_custom_call.1} parent=11 // pred_check
          %p253 = pneg %p139
        $region22: #{tpu_custom_call.1} parent=11 // pred_check_branch
          %255 = sbr.rel (%p253) target = $region24
        $region23: #{tpu_custom_call.1} parent=11 // pred_region
          %s256 = smul.u32 64, %s33
          %s258 = ssub.s32 4096, 4096
          %259 = vsyncadd [#allocation6], %s258
          %s260 = smul.addr %s256, 64
          %s261 = scalar_lea.hbm %s3, %s260
          %s262 = sshll.u32 [#allocation7], 4
          %s263 = int_to_ptr.vmem [resolvable:$true] %s262
          %268 = dma.hbm_to_vmem [thread:$0]  %s261, 4096, %s263, [#allocation6], 64, 64, 4
        $region24: #{tpu_custom_call.1} parent=11 // pred_fallthru
          _
        // Predicated region
        $region25: #{tpu_custom_call.1} parent=11 // pred_check
          %p269 = pneg %p160
        $region26: #{tpu_custom_call.1} parent=11 // pred_check_branch
          %271 = sbr.rel (%p269) target = $region28
        $region27: #{tpu_custom_call.1} parent=11 // pred_region
          _
        $region28: #{tpu_custom_call.1} parent=11 // pred_fallthru
          _
      $region12: #{tpu_custom_call.1} parent=5 // pred_fallthru
        _
      %p272 = scmp.lt.s32.totalorder %s23, 2
      // Predicated region
      $region29: #{tpu_custom_call.1} parent=5 // pred_check
        %p273 = pneg %p272
      $region30: #{tpu_custom_call.1} parent=5 // pred_check_branch
        %275 = sbr.rel (%p273) target = $region32
      $region31: #{tpu_custom_call.1} parent=5 // pred_region
        // Predicated region
        $region33: #{tpu_custom_call.1} parent=31 // pred_check
          %p276 = pneg %p55
        $region34: #{tpu_custom_call.1} parent=31 // pred_check_branch
          %278 = sbr.rel (%p276) target = $region36
        $region35: #{tpu_custom_call.1} parent=31 // pred_region
          %s279 = sand.u32 %s45, 1
          %s280 = scalar_lea.sflag [#allocation3], %s279
          %s281 = sand.u32 %s45, 1
          %s282 = smul.addr %s281, 64
          %s283 = scalar_lea.vmem [#allocation2], %s282
          %s284 = smul.u32 16, %s30
          %s286 = ssub.s32 1024, 1024
          %287 = vsyncadd %s280, %s286
          %s288 = smul.addr %s284, 64
          %s289 = scalar_lea.hbm %s0, %s288
          %s290 = sshll.u32 %s283, 4
          %s291 = int_to_ptr.vmem [resolvable:$true] %s290
          %296 = dma.hbm_to_vmem [thread:$0]  %s289, 1024, %s291, %s280, 64, 64, 4
        $region36: #{tpu_custom_call.1} parent=31 // pred_fallthru
          _
      $region32: #{tpu_custom_call.1} parent=5 // pred_fallthru
        _
      %p297 = scmp.le.s32.totalorder 1, %s23
      %p298 = scmp.lt.s32.totalorder %s23, 3
      %p299 = pnand %p297, %p298
      %p300 = pneg %p299
      // Predicated region
      $region37: #{tpu_custom_call.1} parent=5 // pred_check
        _
      $region38: #{tpu_custom_call.1} parent=5 // pred_check_branch
        %302 = sbr.rel (%p299) target = $region40
      $region39: #{tpu_custom_call.1} parent=5 // pred_region
        %s303 = ssub.s32 %s23, 1
        %s304 = sand.u32 %s48, 1
        %s305 = scalar_lea.sflag [#allocation3], %s304
        %s306 = sand.u32 %s48, 1
        %s307 = smul.addr %s306, 64
        %s308 = scalar_lea.vmem [#allocation2], %s307
        // Predicated region
        $region41: #{tpu_custom_call.1} parent=39 // pred_check
          %p309 = pneg %p61
        $region42: #{tpu_custom_call.1} parent=39 // pred_check_branch
          %311 = sbr.rel (%p309) target = $region44
        $region43: #{tpu_custom_call.1} parent=39 // pred_region
          %312 = dma.done %s305, 1024
        $region44: #{tpu_custom_call.1} parent=39 // pred_fallthru
          _
        // Predicated region
        $region45: #{tpu_custom_call.1} parent=39 // pred_check
          %p313 = pneg %p87
        $region46: #{tpu_custom_call.1} parent=39 // pred_check_branch
          %315 = sbr.rel (%p313) target = $region48
        $region47: #{tpu_custom_call.1} parent=39 // pred_region
          %316 = dma.done [#allocation6], 4096
        $region48: #{tpu_custom_call.1} parent=39 // pred_fallthru
          _
        // Predicated region
        $region49: #{tpu_custom_call.1} parent=39 // pred_check
          %p317 = pneg %p139
        $region50: #{tpu_custom_call.1} parent=39 // pred_check_branch
          %319 = sbr.rel (%p317) target = $region52
        $region51: #{tpu_custom_call.1} parent=39 // pred_region
          %320 = dma.done [#allocation6], 4096
        $region52: #{tpu_custom_call.1} parent=39 // pred_fallthru
          _
        %s321 = sand.u32 %s48, 1
        %s322 = scalar_lea.sflag [#allocation3], %s321
        %s323 = sand.u32 %s48, 1
        %s324 = smul.addr %s323, 64
        %s325 = scalar_lea.vmem [#allocation2], %s324
        %p326 = pneg %p61
        %p327 = pneg %p58
        %p328 = pneg %p87
        %p329 = pneg %p84
        %s330 = smul.u32 4, %s33
        %p331 = scmp.lt.s32.totalorder %s330, 3
        %s332 = scalar_select %p331, %s330, 3
        %s333 = scalar_lea.vmem %s2, %s332
        %p334 = pneg %p113
        %p335 = pneg %p110
        %p336 = pneg %p139
        %p337 = pneg %p136
        %p338 = pneg %p160
        %p339 = pneg %p157
        %p340 = pneg %p186
        %p341 = pneg %p183
        %s342 = sand.u32 %s173, 1
        %s343 = scalar_lea.sflag [#allocation4], %s342
        %s344 = sand.u32 %s173, 1
        %s345 = smul.addr %s344, 128
        %s346 = scalar_lea.vmem [#allocation8], %s345
        %p347 = pneg %p214
        %p348 = pneg %p211
        %s349 = sand.u32 %s201, 1
        %s350 = scalar_lea.sflag [#allocation10], %s349
        %s351 = sand.u32 %s201, 1
        %s352 = smul.addr %s351, 512
        %s353 = scalar_lea.vmem [#allocation9], %s352
        %s354 = smul.u32 16, %s32
        %s355 = smul.u32 4, %s33
        %s356 = smul.u32 4, %s33
        %p357 = scmp.lt.s32.totalorder %s356, 3
        %s358 = scalar_select %p357, %s356, 3
        %s359 = scalar_lea.vmem %s2, %s358
        %s360 = smul.u32 4, %s33
        %s361 = smul.u32 64, %s33
        %s362 = smul.u32 16, %s32
        %s363 = smul.u32 16, %s32
        %s364 = smul.u32 4, %s33
        %p366 = scmp.eq.s32.totalorder %s33, 0
        // Predicated region
        $region53: #{tpu_custom_call.1} parent=39 // pred_check
          %p367 = pneg %p366
        $region54: #{tpu_custom_call.1} parent=39 // pred_check_branch
          %369 = sbr.rel (%p367) target = $region56
        $region55: #{tpu_custom_call.1} parent=39 // pred_region
          %370 = vst [vmem:[%s346] sm:$0xff] 0.0
          %371 = vst [vmem:[%s346 + $0x8] sm:$0xff] 0.0
          %372 = vst [vmem:[%s346 + $0x10] sm:$0xff] 0.0
          %373 = vst [vmem:[%s346 + $0x18] sm:$0xff] 0.0
          %374 = vst [vmem:[%s346 + $0x20] sm:$0xff] 0.0
          %375 = vst [vmem:[%s346 + $0x28] sm:$0xff] 0.0
          %376 = vst [vmem:[%s346 + $0x30] sm:$0xff] 0.0
          %377 = vst [vmem:[%s346 + $0x38] sm:$0xff] 0.0
          %378 = vst [vmem:[%s346 + $0x40] sm:$0xff] 0.0
          %379 = vst [vmem:[%s346 + $0x48] sm:$0xff] 0.0
          %380 = vst [vmem:[%s346 + $0x50] sm:$0xff] 0.0
          %381 = vst [vmem:[%s346 + $0x58] sm:$0xff] 0.0
          %382 = vst [vmem:[%s346 + $0x60] sm:$0xff] 0.0
          %383 = vst [vmem:[%s346 + $0x68] sm:$0xff] 0.0
          %384 = vst [vmem:[%s346 + $0x70] sm:$0xff] 0.0
          %385 = vst [vmem:[%s346 + $0x78] sm:$0xff] 0.0
        $region56: #{tpu_custom_call.1} parent=39 // pred_fallthru
          _
        %v386 = vld [vmem:[%s308] sm:$0xf]
        %v387 = vld [vmem:[%s308 + $0x4] sm:$0xf]
        %v388 = vld [vmem:[%s308 + $0x8] sm:$0xf]
        %v389 = vld [vmem:[%s308 + $0xc] sm:$0xf]
        %v390 = vld [vmem:[%s308 + $0x10] sm:$0xf]
        %v391 = vld [vmem:[%s308 + $0x14] sm:$0xf]
        %v392 = vld [vmem:[%s308 + $0x18] sm:$0xf]
        %v393 = vld [vmem:[%s308 + $0x1c] sm:$0xf]
        %v394 = vld [vmem:[%s308 + $0x20] sm:$0xf]
        %v395 = vld [vmem:[%s308 + $0x24] sm:$0xf]
        %v396 = vld [vmem:[%s308 + $0x28] sm:$0xf]
        %v397 = vld [vmem:[%s308 + $0x2c] sm:$0xf]
        %v398 = vld [vmem:[%s308 + $0x30] sm:$0xf]
        %v399 = vld [vmem:[%s308 + $0x34] sm:$0xf]
        %v400 = vld [vmem:[%s308 + $0x38] sm:$0xf]
        %v401 = vld [vmem:[%s308 + $0x3c] sm:$0xf]
        %v402 = vld [vmem:[#allocation5] sm:$0xff]
        %v403 = vld [vmem:[#allocation5 + $0x8] sm:$0xff]
        %v404 = vld [vmem:[#allocation5 + $0x10] sm:$0xff]
        %v405 = vld [vmem:[#allocation5 + $0x18] sm:$0xff]
        %v406 = vld [vmem:[#allocation5 + $0x20] sm:$0xff]
        %v407 = vld [vmem:[#allocation5 + $0x28] sm:$0xff]
        %v408 = vld [vmem:[#allocation5 + $0x30] sm:$0xff]
        %v409 = vld [vmem:[#allocation5 + $0x38] sm:$0xff]
        %v410 = vld [vmem:[#allocation5 + $0x40] sm:$0xff]
        %v411 = vld [vmem:[#allocation5 + $0x48] sm:$0xff]
        %v412 = vld [vmem:[#allocation5 + $0x50] sm:$0xff]
        %v413 = vld [vmem:[#allocation5 + $0x58] sm:$0xff]
        %v414 = vld [vmem:[#allocation5 + $0x60] sm:$0xff]
        %v415 = vld [vmem:[#allocation5 + $0x68] sm:$0xff]
        %v416 = vld [vmem:[#allocation5 + $0x70] sm:$0xff]
        %v417 = vld [vmem:[#allocation5 + $0x78] sm:$0xff]
        %v418 = vld [vmem:[#allocation5 + $0x80] sm:$0xff]
        %v419 = vld [vmem:[#allocation5 + $0x88] sm:$0xff]
        %v420 = vld [vmem:[#allocation5 + $0x90] sm:$0xff]
        %v421 = vld [vmem:[#allocation5 + $0x98] sm:$0xff]
        %v422 = vld [vmem:[#allocation5 + $0xa0] sm:$0xff]
        %v423 = vld [vmem:[#allocation5 + $0xa8] sm:$0xff]
        %v424 = vld [vmem:[#allocation5 + $0xb0] sm:$0xff]
        %v425 = vld [vmem:[#allocation5 + $0xb8] sm:$0xff]
        %v426 = vld [vmem:[#allocation5 + $0xc0] sm:$0xff]
        %v427 = vld [vmem:[#allocation5 + $0xc8] sm:$0xff]
        %v428 = vld [vmem:[#allocation5 + $0xd0] sm:$0xff]
        %v429 = vld [vmem:[#allocation5 + $0xd8] sm:$0xff]
        %v430 = vld [vmem:[#allocation5 + $0xe0] sm:$0xff]
        %v431 = vld [vmem:[#allocation5 + $0xe8] sm:$0xff]
        %v432 = vld [vmem:[#allocation5 + $0xf0] sm:$0xff]
        %v433 = vld [vmem:[#allocation5 + $0xf8] sm:$0xff]
        %v434 = vld [vmem:[%s359] sm:$0xf]
        %v436 = vlaneseq
        %v437 = vshrl.u32 %v436, 7
        %v438 = vsub.s32 0, %v437
        %v439 = vrot.slane %v434, %v438
        %v440 = vlaneseq
        %v441 = vshrl.u32 %v440, 7
        %v442 = vsub.s32 1, %v441
        %v443 = vrot.slane %v434, %v442
        %v444 = vlaneseq
        %v445 = vshrl.u32 %v444, 7
        %v446 = vsub.s32 2, %v445
        %v447 = vrot.slane %v434, %v446
        %v448 = vlaneseq
        %v449 = vshrl.u32 %v448, 7
        %v450 = vsub.s32 3, %v449
        %v451 = vrot.slane %v434, %v450
        %v472 = vunpack.c.l.b16 %v386
        %v473 = vunpack.c.l.b16 %v387
        %v474 = vunpack.c.l.b16 %v388
        %v475 = vunpack.c.l.b16 %v389
        %v476 = vunpack.c.l.b16 %v390
        %v477 = vunpack.c.l.b16 %v391
        %v478 = vunpack.c.l.b16 %v392
        %v479 = vunpack.c.l.b16 %v393
        %v480 = vunpack.c.l.b16 %v394
        %v481 = vunpack.c.l.b16 %v395
        %v482 = vunpack.c.l.b16 %v396
        %v483 = vunpack.c.l.b16 %v397
        %v484 = vunpack.c.l.b16 %v398
        %v485 = vunpack.c.l.b16 %v399
        %v486 = vunpack.c.l.b16 %v400
        %v487 = vunpack.c.l.b16 %v401
        %v488 = vpack.c.b16 %v473, %v472
        %v489 = vpack.c.b16 %v475, %v474
        %v490 = vpack.c.b16 %v477, %v476
        %v491 = vpack.c.b16 %v479, %v478
        %v492 = vpack.c.b16 %v481, %v480
        %v493 = vpack.c.b16 %v483, %v482
        %v494 = vpack.c.b16 %v485, %v484
        %v495 = vpack.c.b16 %v487, %v486
        %v536 = vunpack.c.l.b16 %v402
        %v537 = vunpack.c.h.b16 %v402
        %v538 = vunpack.c.l.b16 %v403
        %v539 = vunpack.c.h.b16 %v403
        %v540 = vunpack.c.l.b16 %v404
        %v541 = vunpack.c.h.b16 %v404
        %v542 = vunpack.c.l.b16 %v405
        %v543 = vunpack.c.h.b16 %v405
        %v544 = vunpack.c.l.b16 %v406
        %v545 = vunpack.c.h.b16 %v406
        %v546 = vunpack.c.l.b16 %v407
        %v547 = vunpack.c.h.b16 %v407
        %v548 = vunpack.c.l.b16 %v408
        %v549 = vunpack.c.h.b16 %v408
        %v550 = vunpack.c.l.b16 %v409
        %v551 = vunpack.c.h.b16 %v409
        %v552 = vunpack.c.l.b16 %v410
        %v553 = vunpack.c.h.b16 %v410
        %v554 = vunpack.c.l.b16 %v411
        %v555 = vunpack.c.h.b16 %v411
        %v556 = vunpack.c.l.b16 %v412
        %v557 = vunpack.c.h.b16 %v412
        %v558 = vunpack.c.l.b16 %v413
        %v559 = vunpack.c.h.b16 %v413
        %v560 = vunpack.c.l.b16 %v414
        %v561 = vunpack.c.h.b16 %v414
        %v562 = vunpack.c.l.b16 %v415
        %v563 = vunpack.c.h.b16 %v415
        %v564 = vunpack.c.l.b16 %v416
        %v565 = vunpack.c.h.b16 %v416
        %v566 = vunpack.c.l.b16 %v417
        %v567 = vunpack.c.h.b16 %v417
        %v568 = vunpack.c.l.b16 %v418
        %v569 = vunpack.c.h.b16 %v418
        %v570 = vunpack.c.l.b16 %v419
        %v571 = vunpack.c.h.b16 %v419
        %v572 = vunpack.c.l.b16 %v420
        %v573 = vunpack.c.h.b16 %v420
        %v574 = vunpack.c.l.b16 %v421
        %v575 = vunpack.c.h.b16 %v421
        %v576 = vunpack.c.l.b16 %v422
        %v577 = vunpack.c.h.b16 %v422
        %v578 = vunpack.c.l.b16 %v423
        %v579 = vunpack.c.h.b16 %v423
        %v580 = vunpack.c.l.b16 %v424
        %v581 = vunpack.c.h.b16 %v424
        %v582 = vunpack.c.l.b16 %v425
        %v583 = vunpack.c.h.b16 %v425
        %v584 = vunpack.c.l.b16 %v426
        %v585 = vunpack.c.h.b16 %v426
        %v586 = vunpack.c.l.b16 %v427
        %v587 = vunpack.c.h.b16 %v427
        %v588 = vunpack.c.l.b16 %v428
        %v589 = vunpack.c.h.b16 %v428
        %v590 = vunpack.c.l.b16 %v429
        %v591 = vunpack.c.h.b16 %v429
        %v592 = vunpack.c.l.b16 %v430
        %v593 = vunpack.c.h.b16 %v430
        %v594 = vunpack.c.l.b16 %v431
        %v595 = vunpack.c.h.b16 %v431
        %v596 = vunpack.c.l.b16 %v432
        %v597 = vunpack.c.h.b16 %v432
        %v598 = vunpack.c.l.b16 %v433
        %v599 = vunpack.c.h.b16 %v433
        %v600 = vpack.c.b16 %v540, %v536
        %v601 = vpack.c.b16 %v541, %v537
        %v602 = vpack.c.b16 %v542, %v538
        %v603 = vpack.c.b16 %v543, %v539
        %v604 = vpack.c.b16 %v548, %v544
        %v605 = vpack.c.b16 %v549, %v545
        %v606 = vpack.c.b16 %v550, %v546
        %v607 = vpack.c.b16 %v551, %v547
        %v608 = vpack.c.b16 %v556, %v552
        %v609 = vpack.c.b16 %v557, %v553
        %v610 = vpack.c.b16 %v558, %v554
        %v611 = vpack.c.b16 %v559, %v555
        %v612 = vpack.c.b16 %v564, %v560
        %v613 = vpack.c.b16 %v565, %v561
        %v614 = vpack.c.b16 %v566, %v562
        %v615 = vpack.c.b16 %v567, %v563
        %v616 = vpack.c.b16 %v572, %v568
        %v617 = vpack.c.b16 %v573, %v569
        %v618 = vpack.c.b16 %v574, %v570
        %v619 = vpack.c.b16 %v575, %v571
        %v620 = vpack.c.b16 %v580, %v576
        %v621 = vpack.c.b16 %v581, %v577
        %v622 = vpack.c.b16 %v582, %v578
        %v623 = vpack.c.b16 %v583, %v579
        %v624 = vpack.c.b16 %v588, %v584
        %v625 = vpack.c.b16 %v589, %v585
        %v626 = vpack.c.b16 %v590, %v586
        %v627 = vpack.c.b16 %v591, %v587
        %v628 = vpack.c.b16 %v596, %v592
        %v629 = vpack.c.b16 %v597, %v593
        %v630 = vpack.c.b16 %v598, %v594
        %v631 = vpack.c.b16 %v599, %v595
        %664 = vmatprep.subr.bf16.mxu0 %v601
        %665 = vmatpush1.bf16.msra.mxu0 %v600
        %666 = vmatprep.subr.bf16.mxu0 %v605
        %667 = vmatpush1.bf16.msra.mxu0 %v604
        %668 = vmatprep.subr.bf16.mxu0 %v609
        %669 = vmatpush1.bf16.msra.mxu0 %v608
        %670 = vmatprep.subr.bf16.mxu0 %v613
        %671 = vmatpush1.bf16.msra.mxu0 %v612
        %672 = vmatprep.subr.bf16.mxu0 %v617
        %673 = vmatpush1.bf16.msra.mxu0 %v616
        %674 = vmatprep.subr.bf16.mxu0 %v621
        %675 = vmatpush1.bf16.msra.mxu0 %v620
        %676 = vmatprep.subr.bf16.mxu0 %v625
        %677 = vmatpush1.bf16.msra.mxu0 %v624
        %678 = vmatprep.subr.bf16.mxu0 %v629
        %679 = vmatpush1.bf16.msra.mxu0 %v628
        %680 = vmatprep.subr.bf16.mxu0 0
        %681 = vmatpush1.bf16.msra.mxu0 0
        %682 = vmatprep.subr.bf16.mxu0 0
        %683 = vmatpush1.bf16.msra.mxu0 0
        %684 = vmatprep.subr.bf16.mxu0 0
        %685 = vmatpush1.bf16.msra.mxu0 0
        %686 = vmatprep.subr.bf16.mxu0 0
        %687 = vmatpush1.bf16.msra.mxu0 0
        %688 = vmatprep.subr.bf16.mxu0 0
        %689 = vmatpush1.bf16.msra.mxu0 0
        %690 = vmatprep.subr.bf16.mxu0 0
        %691 = vmatpush1.bf16.msra.mxu0 0
        %692 = vmatprep.subr.bf16.mxu0 0
        %693 = vmatpush1.bf16.msra.mxu0 0
        %694 = vmatprep.subr.bf16.mxu0 0
        %695 = vmatpush1.bf16.msra.mxu0 0
        %696 = vmatprep.mubr.bf16.mxu0 0
        %697 = vmatmul.mubr.bf16.gmra.mrb[0].mxu0 %v488
        %v698 = vpop.f32.mrb[0].mxu0
        %v699 = vadd.f32 %v439, %v698
        %v700 = vpop.f32.mrb[0].mxu0
        %v701 = vadd.f32 %v443, %v700
        %v702 = vpop.f32.mrb[0].mxu0
        %v703 = vadd.f32 %v439, %v702
        %v704 = vpop.f32.mrb[0].mxu0
        %v705 = vadd.f32 %v443, %v704
        %706 = vmatprep.mubr.bf16.mxu0 0
        %707 = vmatmul.mubr.bf16.gmra.mrb[0].mxu0 %v489
        %v708 = vpop.f32.mrb[0].mxu0
        %v709 = vadd.f32 %v439, %v708
        %v710 = vpop.f32.mrb[0].mxu0
        %v711 = vadd.f32 %v443, %v710
        %v712 = vpop.f32.mrb[0].mxu0
        %v713 = vadd.f32 %v439, %v712
        %v714 = vpop.f32.mrb[0].mxu0
        %v715 = vadd.f32 %v443, %v714
        %716 = vmatprep.mubr.bf16.mxu0 0
        %717 = vmatmul.mubr.bf16.gmra.mrb[0].mxu0 %v490
        %v718 = vpop.f32.mrb[0].mxu0
        %v719 = vadd.f32 %v439, %v718
        %v720 = vpop.f32.mrb[0].mxu0
        %v721 = vadd.f32 %v443, %v720
        %v722 = vpop.f32.mrb[0].mxu0
        %v723 = vadd.f32 %v439, %v722
        %v724 = vpop.f32.mrb[0].mxu0
        %v725 = vadd.f32 %v443, %v724
        %726 = vmatprep.mubr.bf16.mxu0 0
        %727 = vmatmul.mubr.bf16.gmra.mrb[0].mxu0 %v491
        %v728 = vpop.f32.mrb[0].mxu0
        %v729 = vadd.f32 %v439, %v728
        %v730 = vpop.f32.mrb[0].mxu0
        %v731 = vadd.f32 %v443, %v730
        %v732 = vpop.f32.mrb[0].mxu0
        %v733 = vadd.f32 %v439, %v732
        %v734 = vpop.f32.mrb[0].mxu0
        %v735 = vadd.f32 %v443, %v734
        %736 = vmatprep.mubr.bf16.mxu0 0
        %737 = vmatmul.mubr.bf16.gmra.mrb[0].mxu0 %v492
        %v738 = vpop.f32.mrb[0].mxu0
        %v739 = vadd.f32 %v439, %v738
        %v740 = vpop.f32.mrb[0].mxu0
        %v741 = vadd.f32 %v443, %v740
        %v742 = vpop.f32.mrb[0].mxu0
        %v743 = vadd.f32 %v439, %v742
        %v744 = vpop.f32.mrb[0].mxu0
        %v745 = vadd.f32 %v443, %v744
        %746 = vmatprep.mubr.bf16.mxu0 0
        %747 = vmatmul.mubr.bf16.gmra.mrb[0].mxu0 %v493
        %v748 = vpop.f32.mrb[0].mxu0
        %v749 = vadd.f32 %v439, %v748
        %v750 = vpop.f32.mrb[0].mxu0
        %v751 = vadd.f32 %v443, %v750
        %v752 = vpop.f32.mrb[0].mxu0
        %v753 = vadd.f32 %v439, %v752
        %v754 = vpop.f32.mrb[0].mxu0
        %v755 = vadd.f32 %v443, %v754
        %756 = vmatprep.mubr.bf16.mxu0 0
        %757 = vmatmul.mubr.bf16.gmra.mrb[0].mxu0 %v494
        %v758 = vpop.f32.mrb[0].mxu0
        %v759 = vadd.f32 %v439, %v758
        %v760 = vpop.f32.mrb[0].mxu0
        %v761 = vadd.f32 %v443, %v760
        %v762 = vpop.f32.mrb[0].mxu0
        %v763 = vadd.f32 %v439, %v762
        %v764 = vpop.f32.mrb[0].mxu0
        %v765 = vadd.f32 %v443, %v764
        %766 = vmatprep.mubr.bf16.mxu0 0
        %767 = vmatmul.mubr.bf16.gmra.mrb[0].mxu0 %v495
        %v768 = vpop.f32.mrb[0].mxu0
        %v769 = vadd.f32 %v439, %v768
        %v770 = vpop.f32.mrb[0].mxu0
        %v771 = vadd.f32 %v443, %v770
        %v772 = vpop.f32.mrb[0].mxu0
        %v773 = vadd.f32 %v439, %v772
        %v774 = vpop.f32.mrb[0].mxu0
        %v775 = vadd.f32 %v443, %v774
        %776 = vdwg.mxu0
        %777 = vmatprep.subr.bf16.mxu0 %v603
        %778 = vmatpush1.bf16.msra.mxu0 %v602
        %779 = vmatprep.subr.bf16.mxu0 %v607
        %780 = vmatpush1.bf16.msra.mxu0 %v606
        %781 = vmatprep.subr.bf16.mxu0 %v611
        %782 = vmatpush1.bf16.msra.mxu0 %v610
        %783 = vmatprep.subr.bf16.mxu0 %v615
        %784 = vmatpush1.bf16.msra.mxu0 %v614
        %785 = vmatprep.subr.bf16.mxu0 %v619
        %786 = vmatpush1.bf16.msra.mxu0 %v618
        %787 = vmatprep.subr.bf16.mxu0 %v623
        %788 = vmatpush1.bf16.msra.mxu0 %v622
        %789 = vmatprep.subr.bf16.mxu0 %v627
        %790 = vmatpush1.bf16.msra.mxu0 %v626
        %791 = vmatprep.subr.bf16.mxu0 %v631
        %792 = vmatpush1.bf16.msra.mxu0 %v630
        %793 = vmatprep.subr.bf16.mxu0 0
        %794 = vmatpush1.bf16.msra.mxu0 0
        %795 = vmatprep.subr.bf16.mxu0 0
        %796 = vmatpush1.bf16.msra.mxu0 0
        %797 = vmatprep.subr.bf16.mxu0 0
        %798 = vmatpush1.bf16.msra.mxu0 0
        %799 = vmatprep.subr.bf16.mxu0 0
        %800 = vmatpush1.bf16.msra.mxu0 0
        %801 = vmatprep.subr.bf16.mxu0 0
        %802 = vmatpush1.bf16.msra.mxu0 0
        %803 = vmatprep.subr.bf16.mxu0 0
        %804 = vmatpush1.bf16.msra.mxu0 0
        %805 = vmatprep.subr.bf16.mxu0 0
        %806 = vmatpush1.bf16.msra.mxu0 0
        %807 = vmatprep.subr.bf16.mxu0 0
        %808 = vmatpush1.bf16.msra.mxu0 0
        %809 = vmatprep.mubr.bf16.mxu0 0
        %810 = vmatmul.mubr.bf16.gmra.mrb[0].mxu0 %v488
        %v811 = vpop.f32.mrb[0].mxu0
        %v812 = vadd.f32 %v447, %v811
        %v813 = vpop.f32.mrb[0].mxu0
        %v814 = vadd.f32 %v451, %v813
        %v815 = vpop.f32.mrb[0].mxu0
        %v816 = vadd.f32 %v447, %v815
        %v817 = vpop.f32.mrb[0].mxu0
        %v818 = vadd.f32 %v451, %v817
        %819 = vmatprep.mubr.bf16.mxu0 0
        %820 = vmatmul.mubr.bf16.gmra.mrb[0].mxu0 %v489
        %v821 = vpop.f32.mrb[0].mxu0
        %v822 = vadd.f32 %v447, %v821
        %v823 = vpop.f32.mrb[0].mxu0
        %v824 = vadd.f32 %v451, %v823
        %v825 = vpop.f32.mrb[0].mxu0
        %v826 = vadd.f32 %v447, %v825
        %v827 = vpop.f32.mrb[0].mxu0
        %v828 = vadd.f32 %v451, %v827
        %829 = vmatprep.mubr.bf16.mxu0 0
        %830 = vmatmul.mubr.bf16.gmra.mrb[0].mxu0 %v490
        %v831 = vpop.f32.mrb[0].mxu0
        %v832 = vadd.f32 %v447, %v831
        %v833 = vpop.f32.mrb[0].mxu0
        %v834 = vadd.f32 %v451, %v833
        %v835 = vpop.f32.mrb[0].mxu0
        %v836 = vadd.f32 %v447, %v835
        %v837 = vpop.f32.mrb[0].mxu0
        %v838 = vadd.f32 %v451, %v837
        %839 = vmatprep.mubr.bf16.mxu0 0
        %840 = vmatmul.mubr.bf16.gmra.mrb[0].mxu0 %v491
        %v841 = vpop.f32.mrb[0].mxu0
        %v842 = vadd.f32 %v447, %v841
        %v843 = vpop.f32.mrb[0].mxu0
        %v844 = vadd.f32 %v451, %v843
        %v845 = vpop.f32.mrb[0].mxu0
        %v846 = vadd.f32 %v447, %v845
        %v847 = vpop.f32.mrb[0].mxu0
        %v848 = vadd.f32 %v451, %v847
        %849 = vmatprep.mubr.bf16.mxu0 0
        %850 = vmatmul.mubr.bf16.gmra.mrb[0].mxu0 %v492
        %v851 = vpop.f32.mrb[0].mxu0
        %v852 = vadd.f32 %v447, %v851
        %v853 = vpop.f32.mrb[0].mxu0
        %v854 = vadd.f32 %v451, %v853
        %v855 = vpop.f32.mrb[0].mxu0
        %v856 = vadd.f32 %v447, %v855
        %v857 = vpop.f32.mrb[0].mxu0
        %v858 = vadd.f32 %v451, %v857
        %859 = vmatprep.mubr.bf16.mxu0 0
        %860 = vmatmul.mubr.bf16.gmra.mrb[0].mxu0 %v493
        %v861 = vpop.f32.mrb[0].mxu0
        %v862 = vadd.f32 %v447, %v861
        %v863 = vpop.f32.mrb[0].mxu0
        %v864 = vadd.f32 %v451, %v863
        %v865 = vpop.f32.mrb[0].mxu0
        %v866 = vadd.f32 %v447, %v865
        %v867 = vpop.f32.mrb[0].mxu0
        %v868 = vadd.f32 %v451, %v867
        %869 = vmatprep.mubr.bf16.mxu0 0
        %870 = vmatmul.mubr.bf16.gmra.mrb[0].mxu0 %v494
        %v871 = vpop.f32.mrb[0].mxu0
        %v872 = vadd.f32 %v447, %v871
        %v873 = vpop.f32.mrb[0].mxu0
        %v874 = vadd.f32 %v451, %v873
        %v875 = vpop.f32.mrb[0].mxu0
        %v876 = vadd.f32 %v447, %v875
        %v877 = vpop.f32.mrb[0].mxu0
        %v878 = vadd.f32 %v451, %v877
        %879 = vmatprep.mubr.bf16.mxu0 0
        %880 = vmatmul.mubr.bf16.gmra.mrb[0].mxu0 %v495
        %v881 = vpop.f32.mrb[0].mxu0
        %v882 = vadd.f32 %v447, %v881
        %v883 = vpop.f32.mrb[0].mxu0
        %v884 = vadd.f32 %v451, %v883
        %v885 = vpop.f32.mrb[0].mxu0
        %v886 = vadd.f32 %v447, %v885
        %v887 = vpop.f32.mrb[0].mxu0
        %v888 = vadd.f32 %v451, %v887
        %889 = vdwg.mxu0
        %v890 = vmax.f32 %v699, 0.0
        %v891 = vmax.f32 %v701, 0.0
        %v892 = vmax.f32 %v812, 0.0
        %v893 = vmax.f32 %v814, 0.0
        %v894 = vmax.f32 %v703, 0.0
        %v895 = vmax.f32 %v705, 0.0
        %v896 = vmax.f32 %v816, 0.0
        %v897 = vmax.f32 %v818, 0.0
        %v898 = vmax.f32 %v709, 0.0
        %v899 = vmax.f32 %v711, 0.0
        %v900 = vmax.f32 %v822, 0.0
        %v901 = vmax.f32 %v824, 0.0
        %v902 = vmax.f32 %v713, 0.0
        %v903 = vmax.f32 %v715, 0.0
        %v904 = vmax.f32 %v826, 0.0
        %v905 = vmax.f32 %v828, 0.0
        %v906 = vmax.f32 %v719, 0.0
        %v907 = vmax.f32 %v721, 0.0
        %v908 = vmax.f32 %v832, 0.0
        %v909 = vmax.f32 %v834, 0.0
        %v910 = vmax.f32 %v723, 0.0
        %v911 = vmax.f32 %v725, 0.0
        %v912 = vmax.f32 %v836, 0.0
        %v913 = vmax.f32 %v838, 0.0
        %v914 = vmax.f32 %v729, 0.0
        %v915 = vmax.f32 %v731, 0.0
        %v916 = vmax.f32 %v842, 0.0
        %v917 = vmax.f32 %v844, 0.0
        %v918 = vmax.f32 %v733, 0.0
        %v919 = vmax.f32 %v735, 0.0
        %v920 = vmax.f32 %v846, 0.0
        %v921 = vmax.f32 %v848, 0.0
        %v922 = vmax.f32 %v739, 0.0
        %v923 = vmax.f32 %v741, 0.0
        %v924 = vmax.f32 %v852, 0.0
        %v925 = vmax.f32 %v854, 0.0
        %v926 = vmax.f32 %v743, 0.0
        %v927 = vmax.f32 %v745, 0.0
        %v928 = vmax.f32 %v856, 0.0
        %v929 = vmax.f32 %v858, 0.0
        %v930 = vmax.f32 %v749, 0.0
        %v931 = vmax.f32 %v751, 0.0
        %v932 = vmax.f32 %v862, 0.0
        %v933 = vmax.f32 %v864, 0.0
        %v934 = vmax.f32 %v753, 0.0
        %v935 = vmax.f32 %v755, 0.0
        %v936 = vmax.f32 %v866, 0.0
        %v937 = vmax.f32 %v868, 0.0
        %v938 = vmax.f32 %v759, 0.0
        %v939 = vmax.f32 %v761, 0.0
        %v940 = vmax.f32 %v872, 0.0
        %v941 = vmax.f32 %v874, 0.0
        %v942 = vmax.f32 %v763, 0.0
        %v943 = vmax.f32 %v765, 0.0
        %v944 = vmax.f32 %v876, 0.0
        %v945 = vmax.f32 %v878, 0.0
        %v946 = vmax.f32 %v769, 0.0
        %v947 = vmax.f32 %v771, 0.0
        %v948 = vmax.f32 %v882, 0.0
        %v949 = vmax.f32 %v884, 0.0
        %v950 = vmax.f32 %v773, 0.0
        %v951 = vmax.f32 %v775, 0.0
        %v952 = vmax.f32 %v886, 0.0
        %v953 = vmax.f32 %v888, 0.0
        %954 = vst [vmem:[%s353] sm:$0xff] %v890
        %955 = vst [vmem:[%s353 + $0x8] sm:$0xff] %v891
        %956 = vst [vmem:[%s353 + $0x10] sm:$0xff] %v892
        %957 = vst [vmem:[%s353 + $0x18] sm:$0xff] %v893
        %958 = vst [vmem:[%s353 + $0x20] sm:$0xff] %v894
        %959 = vst [vmem:[%s353 + $0x28] sm:$0xff] %v895
        %960 = vst [vmem:[%s353 + $0x30] sm:$0xff] %v896
        %961 = vst [vmem:[%s353 + $0x38] sm:$0xff] %v897
        %962 = vst [vmem:[%s353 + $0x40] sm:$0xff] %v898
        %963 = vst [vmem:[%s353 + $0x48] sm:$0xff] %v899
        %964 = vst [vmem:[%s353 + $0x50] sm:$0xff] %v900
        %965 = vst [vmem:[%s353 + $0x58] sm:$0xff] %v901
        %966 = vst [vmem:[%s353 + $0x60] sm:$0xff] %v902
        %967 = vst [vmem:[%s353 + $0x68] sm:$0xff] %v903
        %968 = vst [vmem:[%s353 + $0x70] sm:$0xff] %v904
        %969 = vst [vmem:[%s353 + $0x78] sm:$0xff] %v905
        %970 = vst [vmem:[%s353 + $0x80] sm:$0xff] %v906
        %971 = vst [vmem:[%s353 + $0x88] sm:$0xff] %v907
        %972 = vst [vmem:[%s353 + $0x90] sm:$0xff] %v908
        %973 = vst [vmem:[%s353 + $0x98] sm:$0xff] %v909
        %974 = vst [vmem:[%s353 + $0xa0] sm:$0xff] %v910
        %975 = vst [vmem:[%s353 + $0xa8] sm:$0xff] %v911
        %976 = vst [vmem:[%s353 + $0xb0] sm:$0xff] %v912
        %977 = vst [vmem:[%s353 + $0xb8] sm:$0xff] %v913
        %978 = vst [vmem:[%s353 + $0xc0] sm:$0xff] %v914
        %979 = vst [vmem:[%s353 + $0xc8] sm:$0xff] %v915
        %980 = vst [vmem:[%s353 + $0xd0] sm:$0xff] %v916
        %981 = vst [vmem:[%s353 + $0xd8] sm:$0xff] %v917
        %982 = vst [vmem:[%s353 + $0xe0] sm:$0xff] %v918
        %983 = vst [vmem:[%s353 + $0xe8] sm:$0xff] %v919
        %984 = vst [vmem:[%s353 + $0xf0] sm:$0xff] %v920
        %985 = vst [vmem:[%s353 + $0xf8] sm:$0xff] %v921
        %986 = vst [vmem:[%s353 + $0x100] sm:$0xff] %v922
        %987 = vst [vmem:[%s353 + $0x108] sm:$0xff] %v923
        %988 = vst [vmem:[%s353 + $0x110] sm:$0xff] %v924
        %989 = vst [vmem:[%s353 + $0x118] sm:$0xff] %v925
        %990 = vst [vmem:[%s353 + $0x120] sm:$0xff] %v926
        %991 = vst [vmem:[%s353 + $0x128] sm:$0xff] %v927
        %992 = vst [vmem:[%s353 + $0x130] sm:$0xff] %v928
        %993 = vst [vmem:[%s353 + $0x138] sm:$0xff] %v929
        %994 = vst [vmem:[%s353 + $0x140] sm:$0xff] %v930
        %995 = vst [vmem:[%s353 + $0x148] sm:$0xff] %v931
        %996 = vst [vmem:[%s353 + $0x150] sm:$0xff] %v932
        %997 = vst [vmem:[%s353 + $0x158] sm:$0xff] %v933
        %998 = vst [vmem:[%s353 + $0x160] sm:$0xff] %v934
        %999 = vst [vmem:[%s353 + $0x168] sm:$0xff] %v935
        %1000 = vst [vmem:[%s353 + $0x170] sm:$0xff] %v936
        %1001 = vst [vmem:[%s353 + $0x178] sm:$0xff] %v937
        %1002 = vst [vmem:[%s353 + $0x180] sm:$0xff] %v938
        %1003 = vst [vmem:[%s353 + $0x188] sm:$0xff] %v939
        %1004 = vst [vmem:[%s353 + $0x190] sm:$0xff] %v940
        %1005 = vst [vmem:[%s353 + $0x198] sm:$0xff] %v941
        %1006 = vst [vmem:[%s353 + $0x1a0] sm:$0xff] %v942
        %1007 = vst [vmem:[%s353 + $0x1a8] sm:$0xff] %v943
        %1008 = vst [vmem:[%s353 + $0x1b0] sm:$0xff] %v944
        %1009 = vst [vmem:[%s353 + $0x1b8] sm:$0xff] %v945
        %1010 = vst [vmem:[%s353 + $0x1c0] sm:$0xff] %v946
        %1011 = vst [vmem:[%s353 + $0x1c8] sm:$0xff] %v947
        %1012 = vst [vmem:[%s353 + $0x1d0] sm:$0xff] %v948
        %1013 = vst [vmem:[%s353 + $0x1d8] sm:$0xff] %v949
        %1014 = vst [vmem:[%s353 + $0x1e0] sm:$0xff] %v950
        %1015 = vst [vmem:[%s353 + $0x1e8] sm:$0xff] %v951
        %1016 = vst [vmem:[%s353 + $0x1f0] sm:$0xff] %v952
        %1017 = vst [vmem:[%s353 + $0x1f8] sm:$0xff] %v953
        %v1018 = vld [vmem:[%s346] sm:$0xff]
        %v1019 = vld [vmem:[%s346 + $0x8] sm:$0xff]
        %v1020 = vld [vmem:[%s346 + $0x10] sm:$0xff]
        %v1021 = vld [vmem:[%s346 + $0x18] sm:$0xff]
        %v1022 = vld [vmem:[%s346 + $0x20] sm:$0xff]
        %v1023 = vld [vmem:[%s346 + $0x28] sm:$0xff]
        %v1024 = vld [vmem:[%s346 + $0x30] sm:$0xff]
        %v1025 = vld [vmem:[%s346 + $0x38] sm:$0xff]
        %v1026 = vld [vmem:[%s346 + $0x40] sm:$0xff]
        %v1027 = vld [vmem:[%s346 + $0x48] sm:$0xff]
        %v1028 = vld [vmem:[%s346 + $0x50] sm:$0xff]
        %v1029 = vld [vmem:[%s346 + $0x58] sm:$0xff]
        %v1030 = vld [vmem:[%s346 + $0x60] sm:$0xff]
        %v1031 = vld [vmem:[%s346 + $0x68] sm:$0xff]
        %v1032 = vld [vmem:[%s346 + $0x70] sm:$0xff]
        %v1033 = vld [vmem:[%s346 + $0x78] sm:$0xff]
        %v1034 = vpack.c.bf16 %v894, %v890
        %v1035 = vpack.c.bf16 %v895, %v891
        %v1036 = vpack.c.bf16 %v896, %v892
        %v1037 = vpack.c.bf16 %v897, %v893
        %v1038 = vpack.c.bf16 %v902, %v898
        %v1039 = vpack.c.bf16 %v903, %v899
        %v1040 = vpack.c.bf16 %v904, %v900
        %v1041 = vpack.c.bf16 %v905, %v901
        %v1042 = vpack.c.bf16 %v910, %v906
        %v1043 = vpack.c.bf16 %v911, %v907
        %v1044 = vpack.c.bf16 %v912, %v908
        %v1045 = vpack.c.bf16 %v913, %v909
        %v1046 = vpack.c.bf16 %v918, %v914
        %v1047 = vpack.c.bf16 %v919, %v915
        %v1048 = vpack.c.bf16 %v920, %v916
        %v1049 = vpack.c.bf16 %v921, %v917
        %v1050 = vpack.c.bf16 %v926, %v922
        %v1051 = vpack.c.bf16 %v927, %v923
        %v1052 = vpack.c.bf16 %v928, %v924
        %v1053 = vpack.c.bf16 %v929, %v925
        %v1054 = vpack.c.bf16 %v934, %v930
        %v1055 = vpack.c.bf16 %v935, %v931
        %v1056 = vpack.c.bf16 %v936, %v932
        %v1057 = vpack.c.bf16 %v937, %v933
        %v1058 = vpack.c.bf16 %v942, %v938
        %v1059 = vpack.c.bf16 %v943, %v939
        %v1060 = vpack.c.bf16 %v944, %v940
        %v1061 = vpack.c.bf16 %v945, %v941
        %v1062 = vpack.c.bf16 %v950, %v946
        %v1063 = vpack.c.bf16 %v951, %v947
        %v1064 = vpack.c.bf16 %v952, %v948
        %v1065 = vpack.c.bf16 %v953, %v949
        %v1066 = vld [vmem:[#allocation7] sm:$0xf]
        %v1067 = vld [vmem:[#allocation7 + $0x4] sm:$0xf]
        %v1068 = vld [vmem:[#allocation7 + $0x8] sm:$0xf]
        %v1069 = vld [vmem:[#allocation7 + $0xc] sm:$0xf]
        %v1070 = vld [vmem:[#allocation7 + $0x10] sm:$0xf]
        %v1071 = vld [vmem:[#allocation7 + $0x14] sm:$0xf]
        %v1072 = vld [vmem:[#allocation7 + $0x18] sm:$0xf]
        %v1073 = vld [vmem:[#allocation7 + $0x1c] sm:$0xf]
        %v1074 = vld [vmem:[#allocation7 + $0x20] sm:$0xf]
        %v1075 = vld [vmem:[#allocation7 + $0x24] sm:$0xf]
        %v1076 = vld [vmem:[#allocation7 + $0x28] sm:$0xf]
        %v1077 = vld [vmem:[#allocation7 + $0x2c] sm:$0xf]
        %v1078 = vld [vmem:[#allocation7 + $0x30] sm:$0xf]
        %v1079 = vld [vmem:[#allocation7 + $0x34] sm:$0xf]
        %v1080 = vld [vmem:[#allocation7 + $0x38] sm:$0xf]
        %v1081 = vld [vmem:[#allocation7 + $0x3c] sm:$0xf]
        %v1082 = vld [vmem:[#allocation7 + $0x40] sm:$0xf]
        %v1083 = vld [vmem:[#allocation7 + $0x44] sm:$0xf]
        %v1084 = vld [vmem:[#allocation7 + $0x48] sm:$0xf]
        %v1085 = vld [vmem:[#allocation7 + $0x4c] sm:$0xf]
        %v1086 = vld [vmem:[#allocation7 + $0x50] sm:$0xf]
        %v1087 = vld [vmem:[#allocation7 + $0x54] sm:$0xf]
        %v1088 = vld [vmem:[#allocation7 + $0x58] sm:$0xf]
        %v1089 = vld [vmem:[#allocation7 + $0x5c] sm:$0xf]
        %v1090 = vld [vmem:[#allocation7 + $0x60] sm:$0xf]
        %v1091 = vld [vmem:[#allocation7 + $0x64] sm:$0xf]
        %v1092 = vld [vmem:[#allocation7 + $0x68] sm:$0xf]
        %v1093 = vld [vmem:[#allocation7 + $0x6c] sm:$0xf]
        %v1094 = vld [vmem:[#allocation7 + $0x70] sm:$0xf]
        %v1095 = vld [vmem:[#allocation7 + $0x74] sm:$0xf]
        %v1096 = vld [vmem:[#allocation7 + $0x78] sm:$0xf]
        %v1097 = vld [vmem:[#allocation7 + $0x7c] sm:$0xf]
        %v1098 = vld [vmem:[#allocation7 + $0x80] sm:$0xf]
        %v1099 = vld [vmem:[#allocation7 + $0x84] sm:$0xf]
        %v1100 = vld [vmem:[#allocation7 + $0x88] sm:$0xf]
        %v1101 = vld [vmem:[#allocation7 + $0x8c] sm:$0xf]
        %v1102 = vld [vmem:[#allocation7 + $0x90] sm:$0xf]
        %v1103 = vld [vmem:[#allocation7 + $0x94] sm:$0xf]
        %v1104 = vld [vmem:[#allocation7 + $0x98] sm:$0xf]
        %v1105 = vld [vmem:[#allocation7 + $0x9c] sm:$0xf]
        %v1106 = vld [vmem:[#allocation7 + $0xa0] sm:$0xf]
        %v1107 = vld [vmem:[#allocation7 + $0xa4] sm:$0xf]
        %v1108 = vld [vmem:[#allocation7 + $0xa8] sm:$0xf]
        %v1109 = vld [vmem:[#allocation7 + $0xac] sm:$0xf]
        %v1110 = vld [vmem:[#allocation7 + $0xb0] sm:$0xf]
        %v1111 = vld [vmem:[#allocation7 + $0xb4] sm:$0xf]
        %v1112 = vld [vmem:[#allocation7 + $0xb8] sm:$0xf]
        %v1113 = vld [vmem:[#allocation7 + $0xbc] sm:$0xf]
        %v1114 = vld [vmem:[#allocation7 + $0xc0] sm:$0xf]
        %v1115 = vld [vmem:[#allocation7 + $0xc4] sm:$0xf]
        %v1116 = vld [vmem:[#allocation7 + $0xc8] sm:$0xf]
        %v1117 = vld [vmem:[#allocation7 + $0xcc] sm:$0xf]
        %v1118 = vld [vmem:[#allocation7 + $0xd0] sm:$0xf]
        %v1119 = vld [vmem:[#allocation7 + $0xd4] sm:$0xf]
        %v1120 = vld [vmem:[#allocation7 + $0xd8] sm:$0xf]
        %v1121 = vld [vmem:[#allocation7 + $0xdc] sm:$0xf]
        %v1122 = vld [vmem:[#allocation7 + $0xe0] sm:$0xf]
        %v1123 = vld [vmem:[#allocation7 + $0xe4] sm:$0xf]
        %v1124 = vld [vmem:[#allocation7 + $0xe8] sm:$0xf]
        %v1125 = vld [vmem:[#allocation7 + $0xec] sm:$0xf]
        %v1126 = vld [vmem:[#allocation7 + $0xf0] sm:$0xf]
        %v1127 = vld [vmem:[#allocation7 + $0xf4] sm:$0xf]
        %v1128 = vld [vmem:[#allocation7 + $0xf8] sm:$0xf]
        %v1129 = vld [vmem:[#allocation7 + $0xfc] sm:$0xf]
        %v1194 = vunpack.c.l.b16 %v1066
        %v1195 = vunpack.c.l.b16 %v1067
        %v1196 = vunpack.c.l.b16 %v1068
        %v1197 = vunpack.c.l.b16 %v1069
        %v1198 = vunpack.c.l.b16 %v1070
        %v1199 = vunpack.c.l.b16 %v1071
        %v1200 = vunpack.c.l.b16 %v1072
        %v1201 = vunpack.c.l.b16 %v1073
        %v1202 = vunpack.c.l.b16 %v1074
        %v1203 = vunpack.c.l.b16 %v1075
        %v1204 = vunpack.c.l.b16 %v1076
        %v1205 = vunpack.c.l.b16 %v1077
        %v1206 = vunpack.c.l.b16 %v1078
        %v1207 = vunpack.c.l.b16 %v1079
        %v1208 = vunpack.c.l.b16 %v1080
        %v1209 = vunpack.c.l.b16 %v1081
        %v1210 = vunpack.c.l.b16 %v1082
        %v1211 = vunpack.c.l.b16 %v1083
        %v1212 = vunpack.c.l.b16 %v1084
        %v1213 = vunpack.c.l.b16 %v1085
        %v1214 = vunpack.c.l.b16 %v1086
        %v1215 = vunpack.c.l.b16 %v1087
        %v1216 = vunpack.c.l.b16 %v1088
        %v1217 = vunpack.c.l.b16 %v1089
        %v1218 = vunpack.c.l.b16 %v1090
        %v1219 = vunpack.c.l.b16 %v1091
        %v1220 = vunpack.c.l.b16 %v1092
        %v1221 = vunpack.c.l.b16 %v1093
        %v1222 = vunpack.c.l.b16 %v1094
        %v1223 = vunpack.c.l.b16 %v1095
        %v1224 = vunpack.c.l.b16 %v1096
        %v1225 = vunpack.c.l.b16 %v1097
        %v1226 = vunpack.c.l.b16 %v1098
        %v1227 = vunpack.c.l.b16 %v1099
        %v1228 = vunpack.c.l.b16 %v1100
        %v1229 = vunpack.c.l.b16 %v1101
        %v1230 = vunpack.c.l.b16 %v1102
        %v1231 = vunpack.c.l.b16 %v1103
        %v1232 = vunpack.c.l.b16 %v1104
        %v1233 = vunpack.c.l.b16 %v1105
        %v1234 = vunpack.c.l.b16 %v1106
        %v1235 = vunpack.c.l.b16 %v1107
        %v1236 = vunpack.c.l.b16 %v1108
        %v1237 = vunpack.c.l.b16 %v1109
        %v1238 = vunpack.c.l.b16 %v1110
        %v1239 = vunpack.c.l.b16 %v1111
        %v1240 = vunpack.c.l.b16 %v1112
        %v1241 = vunpack.c.l.b16 %v1113
        %v1242 = vunpack.c.l.b16 %v1114
        %v1243 = vunpack.c.l.b16 %v1115
        %v1244 = vunpack.c.l.b16 %v1116
        %v1245 = vunpack.c.l.b16 %v1117
        %v1246 = vunpack.c.l.b16 %v1118
        %v1247 = vunpack.c.l.b16 %v1119
        %v1248 = vunpack.c.l.b16 %v1120
        %v1249 = vunpack.c.l.b16 %v1121
        %v1250 = vunpack.c.l.b16 %v1122
        %v1251 = vunpack.c.l.b16 %v1123
        %v1252 = vunpack.c.l.b16 %v1124
        %v1253 = vunpack.c.l.b16 %v1125
        %v1254 = vunpack.c.l.b16 %v1126
        %v1255 = vunpack.c.l.b16 %v1127
        %v1256 = vunpack.c.l.b16 %v1128
        %v1257 = vunpack.c.l.b16 %v1129
        %v1258 = vpack.c.b16 %v1195, %v1194
        %v1259 = vpack.c.b16 %v1197, %v1196
        %v1260 = vpack.c.b16 %v1199, %v1198
        %v1261 = vpack.c.b16 %v1201, %v1200
        %v1262 = vpack.c.b16 %v1203, %v1202
        %v1263 = vpack.c.b16 %v1205, %v1204
        %v1264 = vpack.c.b16 %v1207, %v1206
        %v1265 = vpack.c.b16 %v1209, %v1208
        %v1266 = vpack.c.b16 %v1211, %v1210
        %v1267 = vpack.c.b16 %v1213, %v1212
        %v1268 = vpack.c.b16 %v1215, %v1214
        %v1269 = vpack.c.b16 %v1217, %v1216
        %v1270 = vpack.c.b16 %v1219, %v1218
        %v1271 = vpack.c.b16 %v1221, %v1220
        %v1272 = vpack.c.b16 %v1223, %v1222
        %v1273 = vpack.c.b16 %v1225, %v1224
        %v1274 = vpack.c.b16 %v1227, %v1226
        %v1275 = vpack.c.b16 %v1229, %v1228
        %v1276 = vpack.c.b16 %v1231, %v1230
        %v1277 = vpack.c.b16 %v1233, %v1232
        %v1278 = vpack.c.b16 %v1235, %v1234
        %v1279 = vpack.c.b16 %v1237, %v1236
        %v1280 = vpack.c.b16 %v1239, %v1238
        %v1281 = vpack.c.b16 %v1241, %v1240
        %v1282 = vpack.c.b16 %v1243, %v1242
        %v1283 = vpack.c.b16 %v1245, %v1244
        %v1284 = vpack.c.b16 %v1247, %v1246
        %v1285 = vpack.c.b16 %v1249, %v1248
        %v1286 = vpack.c.b16 %v1251, %v1250
        %v1287 = vpack.c.b16 %v1253, %v1252
        %v1288 = vpack.c.b16 %v1255, %v1254
        %v1289 = vpack.c.b16 %v1257, %v1256
        %1322 = vmatprep.subr.bf16.mxu0 0
        %1323 = vmatpush1.bf16.msra.mxu0 %v1258
        %1324 = vmatprep.subr.bf16.mxu0 0
        %1325 = vmatpush1.bf16.msra.mxu0 %v1259
        %1326 = vmatprep.subr.bf16.mxu0 0
        %1327 = vmatpush1.bf16.msra.mxu0 %v1260
        %1328 = vmatprep.subr.bf16.mxu0 0
        %1329 = vmatpush1.bf16.msra.mxu0 %v1261
        %1330 = vmatprep.subr.bf16.mxu0 0
        %1331 = vmatpush1.bf16.msra.mxu0 %v1262
        %1332 = vmatprep.subr.bf16.mxu0 0
        %1333 = vmatpush1.bf16.msra.mxu0 %v1263
        %1334 = vmatprep.subr.bf16.mxu0 0
        %1335 = vmatpush1.bf16.msra.mxu0 %v1264
        %1336 = vmatprep.subr.bf16.mxu0 0
        %1337 = vmatpush1.bf16.msra.mxu0 %v1265
        %1338 = vmatprep.subr.bf16.mxu0 0
        %1339 = vmatpush1.bf16.msra.mxu0 %v1266
        %1340 = vmatprep.subr.bf16.mxu0 0
        %1341 = vmatpush1.bf16.msra.mxu0 %v1267
        %1342 = vmatprep.subr.bf16.mxu0 0
        %1343 = vmatpush1.bf16.msra.mxu0 %v1268
        %1344 = vmatprep.subr.bf16.mxu0 0
        %1345 = vmatpush1.bf16.msra.mxu0 %v1269
        %1346 = vmatprep.subr.bf16.mxu0 0
        %1347 = vmatpush1.bf16.msra.mxu0 %v1270
        %1348 = vmatprep.subr.bf16.mxu0 0
        %1349 = vmatpush1.bf16.msra.mxu0 %v1271
        %1350 = vmatprep.subr.bf16.mxu0 0
        %1351 = vmatpush1.bf16.msra.mxu0 %v1272
        %1352 = vmatprep.subr.bf16.mxu0 0
        %1353 = vmatpush1.bf16.msra.mxu0 %v1273
        %1354 = vmatprep.mubr.bf16.mxu0 %v1035
        %1355 = vmatmul.mubr.bf16.gmra.mrb[0].mxu0 %v1034
        %v1356 = vpop.f32.mrb[0].mxu0
        %v1357 = vadd.f32 0.0, %v1356
        %v1358 = vpop.f32.mrb[0].mxu0
        %v1359 = vpop.f32.mrb[0].mxu0
        %v1360 = vadd.f32 0.0, %v1359
        %v1361 = vpop.f32.mrb[0].mxu0
        %1362 = vmatprep.mubr.bf16.mxu0 %v1039
        %1363 = vmatmul.mubr.bf16.gmra.mrb[0].mxu0 %v1038
        %v1364 = vpop.f32.mrb[0].mxu0
        %v1365 = vadd.f32 0.0, %v1364
        %v1366 = vpop.f32.mrb[0].mxu0
        %v1367 = vpop.f32.mrb[0].mxu0
        %v1368 = vadd.f32 0.0, %v1367
        %v1369 = vpop.f32.mrb[0].mxu0
        %1370 = vmatprep.mubr.bf16.mxu0 %v1043
        %1371 = vmatmul.mubr.bf16.gmra.mrb[0].mxu0 %v1042
        %v1372 = vpop.f32.mrb[0].mxu0
        %v1373 = vadd.f32 0.0, %v1372
        %v1374 = vpop.f32.mrb[0].mxu0
        %v1375 = vpop.f32.mrb[0].mxu0
        %v1376 = vadd.f32 0.0, %v1375
        %v1377 = vpop.f32.mrb[0].mxu0
        %1378 = vmatprep.mubr.bf16.mxu0 %v1047
        %1379 = vmatmul.mubr.bf16.gmra.mrb[0].mxu0 %v1046
        %v1380 = vpop.f32.mrb[0].mxu0
        %v1381 = vadd.f32 0.0, %v1380
        %v1382 = vpop.f32.mrb[0].mxu0
        %v1383 = vpop.f32.mrb[0].mxu0
        %v1384 = vadd.f32 0.0, %v1383
        %v1385 = vpop.f32.mrb[0].mxu0
        %1386 = vmatprep.mubr.bf16.mxu0 %v1051
        %1387 = vmatmul.mubr.bf16.gmra.mrb[0].mxu0 %v1050
        %v1388 = vpop.f32.mrb[0].mxu0
        %v1389 = vadd.f32 0.0, %v1388
        %v1390 = vpop.f32.mrb[0].mxu0
        %v1391 = vpop.f32.mrb[0].mxu0
        %v1392 = vadd.f32 0.0, %v1391
        %v1393 = vpop.f32.mrb[0].mxu0
        %1394 = vmatprep.mubr.bf16.mxu0 %v1055
        %1395 = vmatmul.mubr.bf16.gmra.mrb[0].mxu0 %v1054
        %v1396 = vpop.f32.mrb[0].mxu0
        %v1397 = vadd.f32 0.0, %v1396
        %v1398 = vpop.f32.mrb[0].mxu0
        %v1399 = vpop.f32.mrb[0].mxu0
        %v1400 = vadd.f32 0.0, %v1399
        %v1401 = vpop.f32.mrb[0].mxu0
        %1402 = vmatprep.mubr.bf16.mxu0 %v1059
        %1403 = vmatmul.mubr.bf16.gmra.mrb[0].mxu0 %v1058
        %v1404 = vpop.f32.mrb[0].mxu0
        %v1405 = vadd.f32 0.0, %v1404
        %v1406 = vpop.f32.mrb[0].mxu0
        %v1407 = vpop.f32.mrb[0].mxu0
        %v1408 = vadd.f32 0.0, %v1407
        %v1409 = vpop.f32.mrb[0].mxu0
        %1410 = vmatprep.mubr.bf16.mxu0 %v1063
        %1411 = vmatmul.mubr.bf16.gmra.mrb[0].mxu0 %v1062
        %v1412 = vpop.f32.mrb[0].mxu0
        %v1413 = vadd.f32 0.0, %v1412
        %v1414 = vpop.f32.mrb[0].mxu0
        %v1415 = vpop.f32.mrb[0].mxu0
        %v1416 = vadd.f32 0.0, %v1415
        %v1417 = vpop.f32.mrb[0].mxu0
        %1418 = vdwg.mxu0
        %1419 = vmatprep.subr.bf16.mxu0 0
        %1420 = vmatpush1.bf16.msra.mxu0 %v1274
        %1421 = vmatprep.subr.bf16.mxu0 0
        %1422 = vmatpush1.bf16.msra.mxu0 %v1275
        %1423 = vmatprep.subr.bf16.mxu0 0
        %1424 = vmatpush1.bf16.msra.mxu0 %v1276
        %1425 = vmatprep.subr.bf16.mxu0 0
        %1426 = vmatpush1.bf16.msra.mxu0 %v1277
        %1427 = vmatprep.subr.bf16.mxu0 0
        %1428 = vmatpush1.bf16.msra.mxu0 %v1278
        %1429 = vmatprep.subr.bf16.mxu0 0
        %1430 = vmatpush1.bf16.msra.mxu0 %v1279
        %1431 = vmatprep.subr.bf16.mxu0 0
        %1432 = vmatpush1.bf16.msra.mxu0 %v1280
        %1433 = vmatprep.subr.bf16.mxu0 0
        %1434 = vmatpush1.bf16.msra.mxu0 %v1281
        %1435 = vmatprep.subr.bf16.mxu0 0
        %1436 = vmatpush1.bf16.msra.mxu0 %v1282
        %1437 = vmatprep.subr.bf16.mxu0 0
        %1438 = vmatpush1.bf16.msra.mxu0 %v1283
        %1439 = vmatprep.subr.bf16.mxu0 0
        %1440 = vmatpush1.bf16.msra.mxu0 %v1284
        %1441 = vmatprep.subr.bf16.mxu0 0
        %1442 = vmatpush1.bf16.msra.mxu0 %v1285
        %1443 = vmatprep.subr.bf16.mxu0 0
        %1444 = vmatpush1.bf16.msra.mxu0 %v1286
        %1445 = vmatprep.subr.bf16.mxu0 0
        %1446 = vmatpush1.bf16.msra.mxu0 %v1287
        %1447 = vmatprep.subr.bf16.mxu0 0
        %1448 = vmatpush1.bf16.msra.mxu0 %v1288
        %1449 = vmatprep.subr.bf16.mxu0 0
        %1450 = vmatpush1.bf16.msra.mxu0 %v1289
        %1451 = vmatprep.mubr.bf16.mxu0 %v1037
        %1452 = vmatmul.mubr.bf16.gmra.mrb[0].mxu0 %v1036
        %v1453 = vpop.f32.mrb[0].mxu0
        %v1454 = vadd.f32 %v1357, %v1453
        %v1455 = vpop.f32.mrb[0].mxu0
        %v1456 = vpop.f32.mrb[0].mxu0
        %v1457 = vadd.f32 %v1360, %v1456
        %v1458 = vpop.f32.mrb[0].mxu0
        %1459 = vmatprep.mubr.bf16.mxu0 %v1041
        %1460 = vmatmul.mubr.bf16.gmra.mrb[0].mxu0 %v1040
        %v1461 = vpop.f32.mrb[0].mxu0
        %v1462 = vadd.f32 %v1365, %v1461
        %v1463 = vpop.f32.mrb[0].mxu0
        %v1464 = vpop.f32.mrb[0].mxu0
        %v1465 = vadd.f32 %v1368, %v1464
        %v1466 = vpop.f32.mrb[0].mxu0
        %1467 = vmatprep.mubr.bf16.mxu0 %v1045
        %1468 = vmatmul.mubr.bf16.gmra.mrb[0].mxu0 %v1044
        %v1469 = vpop.f32.mrb[0].mxu0
        %v1470 = vadd.f32 %v1373, %v1469
        %v1471 = vpop.f32.mrb[0].mxu0
        %v1472 = vpop.f32.mrb[0].mxu0
        %v1473 = vadd.f32 %v1376, %v1472
        %v1474 = vpop.f32.mrb[0].mxu0
        %1475 = vmatprep.mubr.bf16.mxu0 %v1049
        %1476 = vmatmul.mubr.bf16.gmra.mrb[0].mxu0 %v1048
        %v1477 = vpop.f32.mrb[0].mxu0
        %v1478 = vadd.f32 %v1381, %v1477
        %v1479 = vpop.f32.mrb[0].mxu0
        %v1480 = vpop.f32.mrb[0].mxu0
        %v1481 = vadd.f32 %v1384, %v1480
        %v1482 = vpop.f32.mrb[0].mxu0
        %1483 = vmatprep.mubr.bf16.mxu0 %v1053
        %1484 = vmatmul.mubr.bf16.gmra.mrb[0].mxu0 %v1052
        %v1485 = vpop.f32.mrb[0].mxu0
        %v1486 = vadd.f32 %v1389, %v1485
        %v1487 = vpop.f32.mrb[0].mxu0
        %v1488 = vpop.f32.mrb[0].mxu0
        %v1489 = vadd.f32 %v1392, %v1488
        %v1490 = vpop.f32.mrb[0].mxu0
        %1491 = vmatprep.mubr.bf16.mxu0 %v1057
        %1492 = vmatmul.mubr.bf16.gmra.mrb[0].mxu0 %v1056
        %v1493 = vpop.f32.mrb[0].mxu0
        %v1494 = vadd.f32 %v1397, %v1493
        %v1495 = vpop.f32.mrb[0].mxu0
        %v1496 = vpop.f32.mrb[0].mxu0
        %v1497 = vadd.f32 %v1400, %v1496
        %v1498 = vpop.f32.mrb[0].mxu0
        %1499 = vmatprep.mubr.bf16.mxu0 %v1061
        %1500 = vmatmul.mubr.bf16.gmra.mrb[0].mxu0 %v1060
        %v1501 = vpop.f32.mrb[0].mxu0
        %v1502 = vadd.f32 %v1405, %v1501
        %v1503 = vpop.f32.mrb[0].mxu0
        %v1504 = vpop.f32.mrb[0].mxu0
        %v1505 = vadd.f32 %v1408, %v1504
        %v1506 = vpop.f32.mrb[0].mxu0
        %1507 = vmatprep.mubr.bf16.mxu0 %v1065
        %1508 = vmatmul.mubr.bf16.gmra.mrb[0].mxu0 %v1064
        %v1509 = vpop.f32.mrb[0].mxu0
        %v1510 = vadd.f32 %v1413, %v1509
        %v1511 = vpop.f32.mrb[0].mxu0
        %v1512 = vpop.f32.mrb[0].mxu0
        %v1513 = vadd.f32 %v1416, %v1512
        %v1514 = vpop.f32.mrb[0].mxu0
        %1515 = vdwg.mxu0
        %v1516 = vadd.f32 %v1018, %v1454
        %v1517 = vadd.f32 %v1019, %v1457
        %v1518 = vadd.f32 %v1020, %v1462
        %v1519 = vadd.f32 %v1021, %v1465
        %v1520 = vadd.f32 %v1022, %v1470
        %v1521 = vadd.f32 %v1023, %v1473
        %v1522 = vadd.f32 %v1024, %v1478
        %v1523 = vadd.f32 %v1025, %v1481
        %v1524 = vadd.f32 %v1026, %v1486
        %v1525 = vadd.f32 %v1027, %v1489
        %v1526 = vadd.f32 %v1028, %v1494
        %v1527 = vadd.f32 %v1029, %v1497
        %v1528 = vadd.f32 %v1030, %v1502
        %v1529 = vadd.f32 %v1031, %v1505
        %v1530 = vadd.f32 %v1032, %v1510
        %v1531 = vadd.f32 %v1033, %v1513
        %1532 = vst [vmem:[%s346] sm:$0xff] %v1516
        %1533 = vst [vmem:[%s346 + $0x8] sm:$0xff] %v1517
        %1534 = vst [vmem:[%s346 + $0x10] sm:$0xff] %v1518
        %1535 = vst [vmem:[%s346 + $0x18] sm:$0xff] %v1519
        %1536 = vst [vmem:[%s346 + $0x20] sm:$0xff] %v1520
        %1537 = vst [vmem:[%s346 + $0x28] sm:$0xff] %v1521
        %1538 = vst [vmem:[%s346 + $0x30] sm:$0xff] %v1522
        %1539 = vst [vmem:[%s346 + $0x38] sm:$0xff] %v1523
        %1540 = vst [vmem:[%s346 + $0x40] sm:$0xff] %v1524
        %1541 = vst [vmem:[%s346 + $0x48] sm:$0xff] %v1525
        %1542 = vst [vmem:[%s346 + $0x50] sm:$0xff] %v1526
        %1543 = vst [vmem:[%s346 + $0x58] sm:$0xff] %v1527
        %1544 = vst [vmem:[%s346 + $0x60] sm:$0xff] %v1528
        %1545 = vst [vmem:[%s346 + $0x68] sm:$0xff] %v1529
        %1546 = vst [vmem:[%s346 + $0x70] sm:$0xff] %v1530
        %1547 = vst [vmem:[%s346 + $0x78] sm:$0xff] %v1531
        // Predicated region
        $region57: #{tpu_custom_call.1} parent=39 // pred_check
          %p1548 = pneg %p366
        $region58: #{tpu_custom_call.1} parent=39 // pred_check_branch
          %1550 = sbr.rel (%p1548) target = $region60
        $region59: #{tpu_custom_call.1} parent=39 // pred_region
          %v1551 = vld [vmem:[%s346] sm:$0xff]
          %v1552 = vld [vmem:[%s346 + $0x8] sm:$0xff]
          %v1553 = vld [vmem:[%s346 + $0x10] sm:$0xff]
          %v1554 = vld [vmem:[%s346 + $0x18] sm:$0xff]
          %v1555 = vld [vmem:[%s346 + $0x20] sm:$0xff]
          %v1556 = vld [vmem:[%s346 + $0x28] sm:$0xff]
          %v1557 = vld [vmem:[%s346 + $0x30] sm:$0xff]
          %v1558 = vld [vmem:[%s346 + $0x38] sm:$0xff]
          %v1559 = vld [vmem:[%s346 + $0x40] sm:$0xff]
          %v1560 = vld [vmem:[%s346 + $0x48] sm:$0xff]
          %v1561 = vld [vmem:[%s346 + $0x50] sm:$0xff]
          %v1562 = vld [vmem:[%s346 + $0x58] sm:$0xff]
          %v1563 = vld [vmem:[%s346 + $0x60] sm:$0xff]
          %v1564 = vld [vmem:[%s346 + $0x68] sm:$0xff]
          %v1565 = vld [vmem:[%s346 + $0x70] sm:$0xff]
          %v1566 = vld [vmem:[%s346 + $0x78] sm:$0xff]
          %v1567 = vld [vmem:[%s4] sm:$0x1]
          %v1569 = vlaneseq
          %v1570 = vshrl.u32 %v1569, 7
          %v1571 = vsub.s32 0, %v1570
          %v1572 = vrot.slane %v1567, %v1571
          %v1574 = vadd.f32 %v1551, %v1572
          %v1575 = vadd.f32 %v1552, %v1572
          %v1576 = vadd.f32 %v1553, %v1572
          %v1577 = vadd.f32 %v1554, %v1572
          %v1578 = vadd.f32 %v1555, %v1572
          %v1579 = vadd.f32 %v1556, %v1572
          %v1580 = vadd.f32 %v1557, %v1572
          %v1581 = vadd.f32 %v1558, %v1572
          %v1582 = vadd.f32 %v1559, %v1572
          %v1583 = vadd.f32 %v1560, %v1572
          %v1584 = vadd.f32 %v1561, %v1572
          %v1585 = vadd.f32 %v1562, %v1572
          %v1586 = vadd.f32 %v1563, %v1572
          %v1587 = vadd.f32 %v1564, %v1572
          %v1588 = vadd.f32 %v1565, %v1572
          %v1589 = vadd.f32 %v1566, %v1572
          %1590 = vst [vmem:[%s346] sm:$0xff] %v1574
          %1591 = vst [vmem:[%s346 + $0x8] sm:$0xff] %v1575
          %1592 = vst [vmem:[%s346 + $0x10] sm:$0xff] %v1576
          %1593 = vst [vmem:[%s346 + $0x18] sm:$0xff] %v1577
          %1594 = vst [vmem:[%s346 + $0x20] sm:$0xff] %v1578
          %1595 = vst [vmem:[%s346 + $0x28] sm:$0xff] %v1579
          %1596 = vst [vmem:[%s346 + $0x30] sm:$0xff] %v1580
          %1597 = vst [vmem:[%s346 + $0x38] sm:$0xff] %v1581
          %1598 = vst [vmem:[%s346 + $0x40] sm:$0xff] %v1582
          %1599 = vst [vmem:[%s346 + $0x48] sm:$0xff] %v1583
          %1600 = vst [vmem:[%s346 + $0x50] sm:$0xff] %v1584
          %1601 = vst [vmem:[%s346 + $0x58] sm:$0xff] %v1585
          %1602 = vst [vmem:[%s346 + $0x60] sm:$0xff] %v1586
          %1603 = vst [vmem:[%s346 + $0x68] sm:$0xff] %v1587
          %1604 = vst [vmem:[%s346 + $0x70] sm:$0xff] %v1588
          %1605 = vst [vmem:[%s346 + $0x78] sm:$0xff] %v1589
        $region60: #{tpu_custom_call.1} parent=39 // pred_fallthru
          _
        %s1606 = sand.u32 %s173, 1
        %s1607 = scalar_lea.sflag [#allocation4], %s1606
        %s1608 = sand.u32 %s173, 1
        %s1609 = smul.addr %s1608, 128
        %s1610 = scalar_lea.vmem [#allocation8], %s1609
        %s1611 = sand.u32 %s201, 1
        %s1612 = scalar_lea.sflag [#allocation10], %s1611
        %s1613 = sand.u32 %s201, 1
        %s1614 = smul.addr %s1613, 512
        %s1615 = scalar_lea.vmem [#allocation9], %s1614
        // Predicated region
        $region61: #{tpu_custom_call.1} parent=39 // pred_check
          %p1616 = pneg %p183
        $region62: #{tpu_custom_call.1} parent=39 // pred_check_branch
          %1618 = sbr.rel (%p1616) target = $region64
        $region63: #{tpu_custom_call.1} parent=39 // pred_region
          %s1619 = smul.u32 16, %s32
          %s1621 = ssub.s32 2048, 2048
          %1622 = vsyncadd %s1607, %s1621
          %s1623 = smul.addr %s1619, 128
          %s1624 = scalar_lea.hbm %s5, %s1623
          %s1625 = sshll.u32 %s1610, 4
          %s1626 = int_to_ptr.vmem [resolvable:$true] %s1625
          %1631 = dma.vmem_to_hbm [thread:$0]  %s1626, 2048, %s1624, %s1607, 128, 128, 8
        $region64: #{tpu_custom_call.1} parent=39 // pred_fallthru
          _
        // Predicated region
        $region65: #{tpu_custom_call.1} parent=39 // pred_check
          %p1632 = pneg %p211
        $region66: #{tpu_custom_call.1} parent=39 // pred_check_branch
          %1634 = sbr.rel (%p1632) target = $region68
        $region67: #{tpu_custom_call.1} parent=39 // pred_region
          %s1635 = smul.u32 16, %s32
          %s1636 = smul.u32 4, %s33
          %s1638 = ssub.s32 8192, 8192
          %1639 = vsyncadd %s1612, %s1638
          %s1640 = smul.addr %s1635, 4
          %s1641 = sadd.s32 %s1636, %s1640
          %s1642 = smul.addr %s1641, 128
          %s1643 = scalar_lea.hbm %s6, %s1642
          %s1644 = sshll.u32 %s1615, 4
          %s1645 = int_to_ptr.vmem [resolvable:$true] %s1644
          %1650 = dma.vmem_to_hbm [thread:$0]  %s1645, 8192, %s1643, %s1612, 512, 512, 32
        $region68: #{tpu_custom_call.1} parent=39 // pred_fallthru
          _
      $region40: #{tpu_custom_call.1} parent=5 // pred_fallthru
        _
      %p1651 = scmp.le.s32.totalorder 2, %s23
      // Predicated region
      $region69: #{tpu_custom_call.1} parent=5 // pred_check
        %p1652 = pneg %p1651
      $region70: #{tpu_custom_call.1} parent=5 // pred_check_branch
        %1654 = sbr.rel (%p1652) target = $region72
      $region71: #{tpu_custom_call.1} parent=5 // pred_region
        %s1655 = ssub.s32 %s23, 2
        // Predicated region
        $region73: #{tpu_custom_call.1} parent=71 // pred_check
          %p1656 = pneg %p189
        $region74: #{tpu_custom_call.1} parent=71 // pred_check_branch
          %1658 = sbr.rel (%p1656) target = $region76
        $region75: #{tpu_custom_call.1} parent=71 // pred_region
          %s1659 = sand.u32 %s174, 1
          %s1660 = scalar_lea.sflag [#allocation4], %s1659
          %s1661 = sand.u32 %s174, 1
          %s1662 = smul.addr %s1661, 128
          %s1663 = scalar_lea.vmem [#allocation8], %s1662
          %1664 = dma.done %s1660, 2048
        $region76: #{tpu_custom_call.1} parent=71 // pred_fallthru
          _
        // Predicated region
        $region77: #{tpu_custom_call.1} parent=71 // pred_check
          %p1665 = pneg %p217
        $region78: #{tpu_custom_call.1} parent=71 // pred_check_branch
          %1667 = sbr.rel (%p1665) target = $region80
        $region79: #{tpu_custom_call.1} parent=71 // pred_region
          %s1668 = sand.u32 %s202, 1
          %s1669 = scalar_lea.sflag [#allocation10], %s1668
          %s1670 = sand.u32 %s202, 1
          %s1671 = smul.addr %s1670, 512
          %s1672 = scalar_lea.vmem [#allocation9], %s1671
          %1673 = dma.done %s1669, 8192
        $region80: #{tpu_custom_call.1} parent=71 // pred_fallthru
          _
      $region72: #{tpu_custom_call.1} parent=5 // pred_fallthru
        _
    $region6: #{tpu_custom_call.1} parent=1 // loop_footer
      %s27 = sadd.s32 1, %s23
    $region7: #{tpu_custom_call.1} parent=1 // loop_footer_branch
      %22 = sbr.rel target = $region3
    $region8: #{tpu_custom_call.1} parent=1 // loop_exit
      _
    %1674 = vsyncpa [#allocation3], 1
    %s1675 = scalar_lea.sflag [#allocation3], 1
    %1676 = vsyncpa %s1675, 1
    %1677 = vsyncpa [#allocation6], 1
    %1678 = vsyncpa [#allocation4], 1
    %s1679 = scalar_lea.sflag [#allocation4], 1
    %1680 = vsyncpa %s1679, 1
    %1681 = vsyncpa [#allocation10], 1
    %s1682 = scalar_lea.sflag [#allocation10], 1
    %1683 = vsyncpa %s1682, 1

</llo_original>
